<compile_context>
chip_gen: v7x
topology: tpu7x:2x2x1
jax: 0.10.0
libtpu: 0.0.40
codegen_flags: <defaults>
</compile_context>

<pallas_src>
import functools

import numpy as np
import jax
import jax.numpy as jnp
from jax import lax
from jax.experimental import pallas as pl
from jax.experimental.pallas import tpu as pltpu

HIGHEST = lax.Precision.HIGHEST


def _elu_plus_one(x):
    # torch ELU(alpha=1) + 1  ==  x + 1 if x > 0 else exp(x)
    return jnp.where(x > 0, x + 1.0, jnp.exp(x))


# ----------------------------------------------------------------------------
# Pallas kernel: one batch element per grid step; every head handled in a
# single lane-dense (N, C) tile; one load of x, one store of the output.
# ----------------------------------------------------------------------------
def _linear_attention_kernel(x_ref, w_ref, b_ref, rope_ref, maskh_ref,
                             red_ref, bcast_ref, lepe_ref, o_ref, *, w_sp):
    f32 = jnp.float32
    bf16 = jnp.bfloat16

    x = x_ref[...]                                   # (N, C) f32, original channel order (== v)
    n_seq, c = x.shape
    ch = c // 2
    x_bf = x.astype(bf16)                            # MXU operand copy

    # Fused q|k projection (single MXU pass, 2C output lanes) + ELU + 1.
    qk = jnp.dot(x_bf, w_ref[...], preferred_element_type=f32) + b_ref[...]
    qk = jnp.where(qk > 0, qk + 1.0, jnp.exp(jnp.minimum(qk, 0.0)))

    q = qk[:, :c]                                    # permuted [re | im] channel layout
    k = qk[:, c:]
    q_re, q_im = q[:, :ch], q[:, ch:]
    k_re, k_im = k[:, :ch], k[:, ch:]
    rope = rope_ref[...]
    cos, sin = rope[:, :ch], rope[:, ch:]

    # RoPE rotation; re/im halves stay separate (no lane-axis concatenate).
    q_rr = (q_re * cos - q_im * sin).astype(bf16)    # (N, C/2)
    q_ri = (q_im * cos + q_re * sin).astype(bf16)
    k_rr = (k_re * cos - k_im * sin).astype(bf16)
    k_ri = (k_im * cos + k_re * sin).astype(bf16)

    # z = 1 / (q . mean_n(k) + eps): thin per-head reduce then per-head
    # broadcast (one-hot matmuls, 2*N*C*H FLOPs instead of N*C^2).  bcast_ref
    # is pre-scaled by N, so z here equals z_ref / N and the 1/N attention
    # normalisation is folded in for free.
    k_mean = jnp.mean(k, axis=0, keepdims=True)                                  # (1, C)
    den_h = jnp.dot(q * k_mean, red_ref[...], preferred_element_type=f32)        # (N, H)
    z_den = jnp.dot(den_h, bcast_ref[...], preferred_element_type=f32)           # (N, C) = N*(q.k_mean)
    z = pl.reciprocal(z_den + n_seq * 1e-6, approx=True)

    # Per-head kv and attention: half-width masked matmuls (the per-head
    # block-diagonal structure realised by one (C/2, C) same-head 0/1 mask).
    maskh = maskh_ref[...]                                                       # (C/2, C)
    contract_n = (((0,), (0,)), ((), ()))
    kv_re = lax.dot_general(k_rr, x_bf, contract_n, preferred_element_type=f32)  # (C/2, C)
    kv_im = lax.dot_general(k_ri, x_bf, contract_n, preferred_element_type=f32)
    attn = (jnp.dot(q_rr, (kv_re * maskh).astype(bf16), preferred_element_type=f32)
            + jnp.dot(q_ri, (kv_im * maskh).astype(bf16), preferred_element_type=f32))
    acc = attn * z                                                               # (N, C) f32

    # LePE 3x3 depthwise conv on the (h, w) image, accumulated into the same
    # register-level accumulator: 9 zero-padded row shifts of the already
    # loaded x value + per-tap column masks (row boundaries are handled by the
    # zero padding itself).  No x_ref re-reads, single o_ref store below.
    lepe = lepe_ref[...]                                                         # (10, C): 9 taps + bias
    acc = acc + lepe[9:10, :]
    col = lax.broadcasted_iota(jnp.int32, (n_seq, 1), 0) % w_sp                  # image column, hoisted
    for t in range(9):
        di, dj = t // 3 - 1, t % 3 - 1
        off = di * w_sp + dj
        if off > 0:
            shifted = jnp.concatenate(
                [x[off:, :], jnp.zeros((off, c), f32)], axis=0)
        elif off < 0:
            shifted = jnp.concatenate(
                [jnp.zeros((-off, c), f32), x[:n_seq + off, :]], axis=0)
        else:
            shifted = x
        contrib = shifted * lepe[t:t + 1, :]                                     # per-channel tap weight
        if dj > 0:
            contrib = jnp.where(col < w_sp - dj, contrib, 0.0)
        elif dj < 0:
            contrib = jnp.where(col >= -dj, contrib, 0.0)
        acc = acc + contrib

    o_ref[...] = acc.astype(o_ref.dtype)             # single full-tile, lane-dense store


# ----------------------------------------------------------------------------
# Glue: parameter layout prep (channel permutation, fused weights, RoPE tables,
# head one-hots / mask, LePE tap packing) and the pallas_call wrapper.
# ----------------------------------------------------------------------------
def _rope_tables(h_sp, w_sp, c, base=10000.0):
    k_max = c // 4
    theta = 1.0 / (base ** (jnp.arange(k_max, dtype=jnp.float32) / k_max))
    ai = jnp.arange(h_sp, dtype=jnp.float32)[:, None, None] * theta[None, None, :]
    aj = jnp.arange(w_sp, dtype=jnp.float32)[None, :, None] * theta[None, None, :]
    angles = jnp.concatenate(
        [jnp.broadcast_to(ai, (h_sp, w_sp, k_max)),
         jnp.broadcast_to(aj, (h_sp, w_sp, k_max))], axis=-1)     # (h, w, c//2)
    return jnp.cos(angles), jnp.sin(angles)


def linear_attention_pallas(x, w_qk, b_qk, lepe_w, lepe_b, *,
                            num_heads, input_resolution):
    B, N, C = x.shape
    h_sp, w_sp = input_resolution
    assert h_sp * w_sp == N
    assert C % num_heads == 0 and C % 4 == 0
    d = C // num_heads
    assert d % 2 == 0
    ch = C // 2

    # Global channel permutation: [even (re) channels | odd (im) channels].
    perm = np.concatenate([np.arange(0, C, 2), np.arange(1, C, 2)])

    # Fused q|k projection weight/bias, output channels in the permuted layout.
    # Weight is stored in bf16 (MXU operand dtype); accumulation stays f32.
    w_q, w_k = w_qk[:C], w_qk[C:]                                   # (C_out, C_in)
    w_fused = jnp.concatenate([w_q[perm].T, w_k[perm].T],
                              axis=1).astype(jnp.bfloat16)          # (C, 2C)
    b_fused = jnp.concatenate([b_qk[:C][perm], b_qk[C:][perm]])[None, :]  # (1, 2C)

    # RoPE tables (pair m <-> permuted re/im position m), packed [cos | sin].
    cos_a, sin_a = _rope_tables(h_sp, w_sp, C)                      # (h, w, C//2)
    rope_pack = jnp.concatenate([cos_a.reshape(N, ch),
                                 sin_a.reshape(N, ch)], axis=1)     # (N, C)

    # Head bookkeeping: same-head 0/1 mask for one re/im half (identical for
    # both halves) and the thin one-hot reduce / broadcast matrices for z.
    head_perm = perm // d                         # head id of each permuted q/k channel
    head_orig = np.arange(C) // d                 # head id of each original (v / output) channel
    mask_half = jnp.asarray(
        (head_perm[:ch, None] == head_orig[None, :]).astype(np.float32))        # (C/2, C)
    red = jnp.asarray(
        (head_perm[:, None] == np.arange(num_heads)[None, :]).astype(np.float32))  # (C, H)
    bcast = jnp.asarray(
        (np.arange(num_heads)[:, None] == head_orig[None, :]).astype(np.float32)
        * float(N))                                                              # (H, C), folds 1/N into z

    # LePE depthwise taps (row t = kernel position (t//3, t%3)) + bias (row 9).
    lw = lepe_w[:, 0].reshape(C, 9).T                               # (9, C)
    lepe_pack = jnp.concatenate([lw, lepe_b[None, :]], axis=0)      # (10, C)

    # Explicit VMEM budget: double-buffered x/out blocks + (8,128)-padded
    # constants + a conservative bound on live in-kernel (N, C)-sized
    # temporaries, clamped to [32 MiB, 64 MiB] (a valid scoped limit on
    # v5e / v6e / v7x).
    n_pad = -(-N // 8) * 8
    c_pad = -(-C // 128) * 128
    blk = n_pad * c_pad * 4
    vmem_bytes = 4 * blk                     # x + out blocks, double buffered
    vmem_bytes += 2 * blk                    # rope table (double-buffered constant)
    vmem_bytes += 16 * blk                   # live (N, C)-sized temporaries (qk, rope halves, acc, ...)
    vmem_bytes += 10 * c_pad * c_pad * 4     # weight / mask / kv sized buffers
    vmem_bytes += 2 << 20                    # headroom
    vmem_bytes = int(min(max(vmem_bytes, 32 << 20), 64 << 20))
    # TODO(synk): for very large input resolutions add an N-tiling grid axis
    # (two-phase kv accumulation) and single-buffer the grid-invariant
    # constants instead of relying on a monolithic (N, C) block per step.

    kernel = functools.partial(_linear_attention_kernel, w_sp=w_sp)

    return pl.pallas_call(
        kernel,
        grid=(B,),
        in_specs=[
            pl.BlockSpec((None, N, C), lambda b: (b, 0, 0)),        # x (== v)
            pl.BlockSpec((C, 2 * C), lambda b: (0, 0)),             # fused qk weight (bf16)
            pl.BlockSpec((1, 2 * C), lambda b: (0, 0)),             # fused qk bias
            pl.BlockSpec((N, C), lambda b: (0, 0)),                 # RoPE [cos | sin]
            pl.BlockSpec((ch, C), lambda b: (0, 0)),                # same-head half mask
            pl.BlockSpec((C, num_heads), lambda b: (0, 0)),         # per-head reduce one-hot
            pl.BlockSpec((num_heads, C), lambda b: (0, 0)),         # per-head broadcast (x N)
            pl.BlockSpec((10, C), lambda b: (0, 0)),                # LePE taps + bias
        ],
        out_specs=pl.BlockSpec((None, N, C), lambda b: (b, 0, 0)),
        out_shape=jax.ShapeDtypeStruct((B, N, C), jnp.float32),
        compiler_params=pltpu.CompilerParams(
            dimension_semantics=("parallel",),
            vmem_limit_bytes=vmem_bytes),
    )(x, w_fused, b_fused, rope_pack, mask_half, red, bcast, lepe_pack)


# ----------------------------------------------------------------------------
# Pure-JAX reference, faithful to the PyTorch module (interleaved RoPE).
# ----------------------------------------------------------------------------
def linear_attention_reference(x, w_qk, b_qk, lepe_w, lepe_b, *,
                               num_heads, input_resolution):
    B, N, C = x.shape
    h_sp, w_sp = input_resolution
    d = C // num_heads

    qk = jnp.einsum('bnc,oc->bno', x, w_qk, precision=HIGHEST) + b_qk
    q, k = qk[..., :C], qk[..., C:]
    q, k = _elu_plus_one(q), _elu_plus_one(k)

    cos_a, sin_a = _rope_tables(h_sp, w_sp, C)                     # (h, w, C//2)

    def rope(t):
        t4 = t.reshape(B, h_sp, w_sp, C)
        tr, ti = t4[..., 0::2], t4[..., 1::2]
        out = jnp.stack([cos_a * tr - sin_a * ti,
                         cos_a * ti + sin_a * tr], axis=-1)
        return out.reshape(B, N, C)

    def heads(t):
        return t.reshape(B, N, num_heads, d).transpose(0, 2, 1, 3)

    q_rope, k_rope = heads(rope(q)), heads(rope(k))
    qh, kh, vh = heads(q), heads(k), heads(x)

    k_mean = kh.mean(axis=2, keepdims=True)                        # (B,H,1,d)
    z = 1.0 / (jnp.einsum('bhnd,bhmd->bhnm', qh, k_mean,
                          precision=HIGHEST) + 1e-06)              # (B,H,N,1)
    scale = N ** -0.5
    kv = jnp.einsum('bhnd,bhne->bhde', k_rope * scale, vh * scale,
                    precision=HIGHEST)
    out = jnp.einsum('bhnd,bhde->bhne', q_rope, kv, precision=HIGHEST) * z
    out = out.transpose(0, 2, 1, 3).reshape(B, N, C)

    v_img = x.reshape(B, h_sp, w_sp, C).transpose(0, 3, 1, 2)      # NCHW
    lep = lax.conv_general_dilated(
        v_img, lepe_w, window_strides=(1, 1), padding=((1, 1), (1, 1)),
        feature_group_count=C, dimension_numbers=('NCHW', 'OIHW', 'NCHW'),
        precision=HIGHEST) + lepe_b[None, :, None, None]
    lep = lep.transpose(0, 2, 3, 1).reshape(B, N, C)
    return out + lep


if __name__ == "__main__":
    B, H_SP, W_SP, C, NUM_HEADS = 2, 8, 8, 32, 4
    N = H_SP * W_SP

    key = jax.random.PRNGKey(0)
    k0, k1, k2, k3, k4 = jax.random.split(key, 5)
    x = jax.random.normal(k0, (B, N, C), jnp.float32)
    w_qk = jax.random.normal(k1, (2 * C, C), jnp.float32) * 0.05   # nn.Linear(C, 2C)
    b_qk = jax.random.normal(k2, (2 * C,), jnp.float32) * 0.05
    lepe_w = jax.random.normal(k3, (C, 1, 3, 3), jnp.float32) * 0.1  # depthwise conv
    lepe_b = jax.random.normal(k4, (C,), jnp.float32) * 0.1

    out = linear_attention_pallas(
        x, w_qk, b_qk, lepe_w, lepe_b,
        num_heads=NUM_HEADS, input_resolution=(H_SP, W_SP))
    out = jax.block_until_ready(out)

    ref = linear_attention_reference(
        x, w_qk, b_qk, lepe_w, lepe_b,
        num_heads=NUM_HEADS, input_resolution=(H_SP, W_SP))
    ref = jax.block_until_ready(ref)

    assert out.shape == (B, N, C) and out.dtype == jnp.float32
    # Kernel matmuls use bf16 MXU operands with f32 accumulation (and an EUP
    # approximate reciprocal for z) while the reference uses HIGHEST-precision
    # f32, so compare with a correspondingly loosened tolerance.
    max_err = float(jnp.max(jnp.abs(out - ref)))
    if not bool(jnp.allclose(out, ref, rtol=5e-3, atol=5e-3)):
        raise AssertionError(f"Pallas output mismatch, max abs err = {max_err}")
    print("KERNEL_OK")
</pallas_src>

<mosaic_0001>
module attributes {stable_mosaic.version = 11 : i64} {
  func.func @_linear_attention_kernel(%arg0: i32, %arg1: memref<1x64x32xf32, #tpu.memory_space<vmem>>, %arg2: memref<32x64xbf16, #tpu.memory_space<vmem>>, %arg3: memref<1x64xf32, #tpu.memory_space<vmem>>, %arg4: memref<64x32xf32, #tpu.memory_space<vmem>>, %arg5: memref<16x32xf32, #tpu.memory_space<vmem>>, %arg6: memref<32x4xf32, #tpu.memory_space<vmem>>, %arg7: memref<4x32xf32, #tpu.memory_space<vmem>>, %arg8: memref<10x32xf32, #tpu.memory_space<vmem>>, %arg9: memref<1x64x32xf32, #tpu.memory_space<vmem>>) attributes {dimension_semantics = [#tpu.dimension_semantics<parallel>], iteration_bounds = array<i64: 2>, scalar_prefetch = 0 : i64, scratch_operands = 0 : i64, tpu.core_type = #tpu.core_type<tc>, window_params = [{transform_indices = @transform_0, window_bounds = array<i64: 1, 64, 32>}, {pipeline_mode = #tpu.pipeline_mode<synchronous>, transform_indices = @transform_1, window_bounds = array<i64: 32, 64>}, {pipeline_mode = #tpu.pipeline_mode<synchronous>, transform_indices = @transform_2, window_bounds = array<i64: 1, 64>}, {pipeline_mode = #tpu.pipeline_mode<synchronous>, transform_indices = @transform_3, window_bounds = array<i64: 64, 32>}, {pipeline_mode = #tpu.pipeline_mode<synchronous>, transform_indices = @transform_4, window_bounds = array<i64: 16, 32>}, {pipeline_mode = #tpu.pipeline_mode<synchronous>, transform_indices = @transform_5, window_bounds = array<i64: 32, 4>}, {pipeline_mode = #tpu.pipeline_mode<synchronous>, transform_indices = @transform_6, window_bounds = array<i64: 4, 32>}, {pipeline_mode = #tpu.pipeline_mode<synchronous>, transform_indices = @transform_7, window_bounds = array<i64: 10, 32>}, {transform_indices = @transform_8, window_bounds = array<i64: 1, 64, 32>}]} {
    %c0 = arith.constant 0 : index
    %c0_0 = arith.constant 0 : index
    %c0_1 = arith.constant 0 : index
    %0 = vector.load %arg1[%c0, %c0_0, %c0_1] : memref<1x64x32xf32, #tpu.memory_space<vmem>>, vector<1x64x32xf32>
    %1 = vector.shape_cast %0 : vector<1x64x32xf32> to vector<64x32xf32>
    %2 = arith.truncf %1 : vector<64x32xf32> to vector<64x32xbf16>
    %c0_2 = arith.constant 0 : index
    %c0_3 = arith.constant 0 : index
    %3 = vector.load %arg2[%c0_2, %c0_3] : memref<32x64xbf16, #tpu.memory_space<vmem>>, vector<32x64xbf16>
    %cst = arith.constant dense<0.000000e+00> : vector<64x64xf32>
    %4 = tpu.matmul %2, %3, %cst {dimension_numbers = #tpu.dot_dimension_numbers<[1], [0], [0], [1], [0, 0, 1, 1], [], []>} : vector<64x32xbf16>, vector<32x64xbf16>, vector<64x64xf32> -> vector<64x64xf32>
    %c0_4 = arith.constant 0 : index
    %c0_5 = arith.constant 0 : index
    %5 = vector.load %arg3[%c0_4, %c0_5] : memref<1x64xf32, #tpu.memory_space<vmem>>, vector<1x64xf32>
    %6 = vector.broadcast %5 : vector<1x64xf32> to vector<64x64xf32>
    %7 = arith.addf %4, %6 : vector<64x64xf32>
    %cst_6 = arith.constant 0.000000e+00 : f32
    %8 = vector.broadcast %cst_6 : f32 to vector<64x64xf32>
    %9 = arith.cmpf ogt, %7, %8 : vector<64x64xf32>
    %cst_7 = arith.constant 1.000000e+00 : f32
    %10 = vector.broadcast %cst_7 : f32 to vector<64x64xf32>
    %11 = arith.addf %7, %10 : vector<64x64xf32>
    %cst_8 = arith.constant 0.000000e+00 : f32
    %12 = vector.broadcast %cst_8 : f32 to vector<64x64xf32>
    %13 = arith.minimumf %7, %12 : vector<64x64xf32>
    %14 = math.exp %13 : vector<64x64xf32>
    %15 = arith.select %9, %11, %14 : vector<64x64xi1>, vector<64x64xf32>
    %16 = vector.extract_strided_slice %15 {offsets = [0, 0], sizes = [64, 32], strides = [1, 1]} : vector<64x64xf32> to vector<64x32xf32>
    %17 = vector.extract_strided_slice %15 {offsets = [0, 32], sizes = [64, 32], strides = [1, 1]} : vector<64x64xf32> to vector<64x32xf32>
    %18 = vector.extract_strided_slice %16 {offsets = [0, 0], sizes = [64, 16], strides = [1, 1]} : vector<64x32xf32> to vector<64x16xf32>
    %19 = vector.extract_strided_slice %16 {offsets = [0, 16], sizes = [64, 16], strides = [1, 1]} : vector<64x32xf32> to vector<64x16xf32>
    %20 = vector.extract_strided_slice %17 {offsets = [0, 0], sizes = [64, 16], strides = [1, 1]} : vector<64x32xf32> to vector<64x16xf32>
    %21 = vector.extract_strided_slice %17 {offsets = [0, 16], sizes = [64, 16], strides = [1, 1]} : vector<64x32xf32> to vector<64x16xf32>
    %c0_9 = arith.constant 0 : index
    %c0_10 = arith.constant 0 : index
    %22 = vector.load %arg4[%c0_9, %c0_10] : memref<64x32xf32, #tpu.memory_space<vmem>>, vector<64x32xf32>
    %23 = vector.extract_strided_slice %22 {offsets = [0, 0], sizes = [64, 16], strides = [1, 1]} : vector<64x32xf32> to vector<64x16xf32>
    %24 = vector.extract_strided_slice %22 {offsets = [0, 16], sizes = [64, 16], strides = [1, 1]} : vector<64x32xf32> to vector<64x16xf32>
    %25 = arith.mulf %18, %23 : vector<64x16xf32>
    %26 = arith.mulf %19, %24 : vector<64x16xf32>
    %27 = arith.subf %25, %26 : vector<64x16xf32>
    %28 = arith.truncf %27 : vector<64x16xf32> to vector<64x16xbf16>
    %29 = arith.mulf %19, %23 : vector<64x16xf32>
    %30 = arith.mulf %18, %24 : vector<64x16xf32>
    %31 = arith.addf %29, %30 : vector<64x16xf32>
    %32 = arith.truncf %31 : vector<64x16xf32> to vector<64x16xbf16>
    %33 = arith.mulf %20, %23 : vector<64x16xf32>
    %34 = arith.mulf %21, %24 : vector<64x16xf32>
    %35 = arith.subf %33, %34 : vector<64x16xf32>
    %36 = arith.truncf %35 : vector<64x16xf32> to vector<64x16xbf16>
    %37 = arith.mulf %21, %23 : vector<64x16xf32>
    %38 = arith.mulf %20, %24 : vector<64x16xf32>
    %39 = arith.addf %37, %38 : vector<64x16xf32>
    %40 = arith.truncf %39 : vector<64x16xf32> to vector<64x16xbf16>
    %cst_11 = arith.constant dense<0.000000e+00> : vector<32xf32>
    %41 = vector.multi_reduction <add>, %17, %cst_11 [0] : vector<64x32xf32> to vector<32xf32>
    %42 = vector.shape_cast %41 : vector<32xf32> to vector<1x32xf32>
    %cst_12 = arith.constant 6.400000e+01 : f32
    %43 = vector.broadcast %cst_12 : f32 to vector<1x32xf32>
    %44 = arith.divf %42, %43 : vector<1x32xf32>
    %45 = vector.broadcast %44 : vector<1x32xf32> to vector<64x32xf32>
    %46 = arith.mulf %16, %45 : vector<64x32xf32>
    %c0_13 = arith.constant 0 : index
    %c0_14 = arith.constant 0 : index
    %47 = vector.load %arg6[%c0_13, %c0_14] : memref<32x4xf32, #tpu.memory_space<vmem>>, vector<32x4xf32>
    %cst_15 = arith.constant dense<0.000000e+00> : vector<64x4xf32>
    %48 = tpu.matmul %46, %47, %cst_15 {dimension_numbers = #tpu.dot_dimension_numbers<[1], [0], [0], [1], [0, 0, 1, 1], [], []>} : vector<64x32xf32>, vector<32x4xf32>, vector<64x4xf32> -> vector<64x4xf32>
    %c0_16 = arith.constant 0 : index
    %c0_17 = arith.constant 0 : index
    %49 = vector.load %arg7[%c0_16, %c0_17] : memref<4x32xf32, #tpu.memory_space<vmem>>, vector<4x32xf32>
    %cst_18 = arith.constant dense<0.000000e+00> : vector<64x32xf32>
    %50 = tpu.matmul %48, %49, %cst_18 {dimension_numbers = #tpu.dot_dimension_numbers<[1], [0], [0], [1], [0, 0, 1, 1], [], []>} : vector<64x4xf32>, vector<4x32xf32>, vector<64x32xf32> -> vector<64x32xf32>
    %cst_19 = arith.constant 6.400000e-05 : f32
    %51 = vector.broadcast %cst_19 : f32 to vector<64x32xf32>
    %52 = arith.addf %50, %51 : vector<64x32xf32>
    %53 = tpu.reciprocal %52 {approx = true} : vector<64x32xf32> -> vector<64x32xf32>
    %c0_20 = arith.constant 0 : index
    %c0_21 = arith.constant 0 : index
    %54 = vector.load %arg5[%c0_20, %c0_21] : memref<16x32xf32, #tpu.memory_space<vmem>>, vector<16x32xf32>
    %cst_22 = arith.constant dense<0.000000e+00> : vector<16x32xf32>
    %55 = tpu.matmul %36, %2, %cst_22 {dimension_numbers = #tpu.dot_dimension_numbers<[0], [0], [1], [1], [0, 1, 1, 1], [], []>} : vector<64x16xbf16>, vector<64x32xbf16>, vector<16x32xf32> -> vector<16x32xf32>
    %cst_23 = arith.constant dense<0.000000e+00> : vector<16x32xf32>
    %56 = tpu.matmul %40, %2, %cst_23 {dimension_numbers = #tpu.dot_dimension_numbers<[0], [0], [1], [1], [0, 1, 1, 1], [], []>} : vector<64x16xbf16>, vector<64x32xbf16>, vector<16x32xf32> -> vector<16x32xf32>
    %57 = arith.mulf %55, %54 : vector<16x32xf32>
    %58 = arith.truncf %57 : vector<16x32xf32> to vector<16x32xbf16>
    %cst_24 = arith.constant dense<0.000000e+00> : vector<64x32xf32>
    %59 = tpu.matmul %28, %58, %cst_24 {dimension_numbers = #tpu.dot_dimension_numbers<[1], [0], [0], [1], [0, 0, 1, 1], [], []>} : vector<64x16xbf16>, vector<16x32xbf16>, vector<64x32xf32> -> vector<64x32xf32>
    %60 = arith.mulf %56, %54 : vector<16x32xf32>
    %61 = arith.truncf %60 : vector<16x32xf32> to vector<16x32xbf16>
    %cst_25 = arith.constant dense<0.000000e+00> : vector<64x32xf32>
    %62 = tpu.matmul %32, %61, %cst_25 {dimension_numbers = #tpu.dot_dimension_numbers<[1], [0], [0], [1], [0, 0, 1, 1], [], []>} : vector<64x16xbf16>, vector<16x32xbf16>, vector<64x32xf32> -> vector<64x32xf32>
    %63 = arith.addf %59, %62 : vector<64x32xf32>
    %64 = arith.mulf %63, %53 : vector<64x32xf32>
    %c0_26 = arith.constant 0 : index
    %c0_27 = arith.constant 0 : index
    %65 = vector.load %arg8[%c0_26, %c0_27] : memref<10x32xf32, #tpu.memory_space<vmem>>, vector<10x32xf32>
    %66 = vector.extract_strided_slice %65 {offsets = [9, 0], sizes = [1, 32], strides = [1, 1]} : vector<10x32xf32> to vector<1x32xf32>
    %67 = vector.broadcast %66 : vector<1x32xf32> to vector<64x32xf32>
    %68 = arith.addf %64, %67 : vector<64x32xf32>
    %69 = tpu.iota {dimensions = array<i32: 0>} : vector<64x1xi32>
    %c8_i32 = arith.constant 8 : i32
    %c0_i32 = arith.constant 0 : i32
    %70 = arith.cmpi eq, %c8_i32, %c0_i32 : i32
    %c1_i32 = arith.constant 1 : i32
    %71 = arith.select %70, %c1_i32, %c8_i32 : i32
    %72 = vector.broadcast %71 : i32 to vector<64x1xi32>
    %73 = arith.remsi %69, %72 : vector<64x1xi32>
    %c0_i32_28 = arith.constant 0 : i32
    %74 = vector.broadcast %c0_i32_28 : i32 to vector<64x1xi32>
    %75 = arith.cmpi ne, %73, %74 : vector<64x1xi32>
    %c0_i32_29 = arith.constant 0 : i32
    %76 = vector.broadcast %c0_i32_29 : i32 to vector<64x1xi32>
    %77 = arith.cmpi slt, %73, %76 : vector<64x1xi32>
    %c0_i32_30 = arith.constant 0 : i32
    %78 = arith.cmpi slt, %71, %c0_i32_30 : i32
    %79 = vector.broadcast %78 : i1 to vector<64x1xi1>
    %80 = vector.broadcast %79 : vector<64x1xi1> to vector<64x1xi1>
    %81 = arith.xori %77, %80 : vector<64x1xi1>
    %82 = arith.andi %81, %75 : vector<64x1xi1>
    %83 = vector.broadcast %71 : i32 to vector<64x1xi32>
    %84 = arith.addi %73, %83 : vector<64x1xi32>
    %85 = arith.select %82, %84, %73 : vector<64x1xi1>, vector<64x1xi32>
    %cst_31 = arith.constant 0.000000e+00 : f32
    %86 = vector.broadcast %cst_31 : f32 to vector<9x32xf32>
    %87 = vector.extract_strided_slice %1 {offsets = [0, 0], sizes = [55, 32], strides = [1, 1]} : vector<64x32xf32> to vector<55x32xf32>
    %88 = tpu.concatenate %86, %87 in 0 : vector<9x32xf32>, vector<55x32xf32> -> vector<64x32xf32>
    %89 = vector.extract_strided_slice %65 {offsets = [0, 0], sizes = [1, 32], strides = [1, 1]} : vector<10x32xf32> to vector<1x32xf32>
    %90 = vector.broadcast %89 : vector<1x32xf32> to vector<64x32xf32>
    %91 = arith.mulf %88, %90 : vector<64x32xf32>
    %c1_i32_32 = arith.constant 1 : i32
    %92 = vector.broadcast %c1_i32_32 : i32 to vector<64x1xi32>
    %93 = arith.cmpi sge, %85, %92 : vector<64x1xi32>
    %cst_33 = arith.constant 0.000000e+00 : f32
    %94 = vector.shape_cast %93 : vector<64x1xi1> to vector<64x1xi1>
    %95 = vector.broadcast %94 : vector<64x1xi1> to vector<64x32xi1>
    %96 = vector.broadcast %cst_33 : f32 to vector<64x32xf32>
    %97 = arith.select %95, %91, %96 : vector<64x32xi1>, vector<64x32xf32>
    %98 = arith.addf %68, %97 : vector<64x32xf32>
    %cst_34 = arith.constant 0.000000e+00 : f32
    %99 = vector.broadcast %cst_34 : f32 to vector<8x32xf32>
    %100 = vector.extract_strided_slice %1 {offsets = [0, 0], sizes = [56, 32], strides = [1, 1]} : vector<64x32xf32> to vector<56x32xf32>
    %101 = tpu.concatenate %99, %100 in 0 : vector<8x32xf32>, vector<56x32xf32> -> vector<64x32xf32>
    %102 = vector.extract_strided_slice %65 {offsets = [1, 0], sizes = [1, 32], strides = [1, 1]} : vector<10x32xf32> to vector<1x32xf32>
    %103 = vector.broadcast %102 : vector<1x32xf32> to vector<64x32xf32>
    %104 = arith.mulf %101, %103 : vector<64x32xf32>
    %105 = arith.addf %98, %104 : vector<64x32xf32>
    %cst_35 = arith.constant 0.000000e+00 : f32
    %106 = vector.broadcast %cst_35 : f32 to vector<7x32xf32>
    %107 = vector.extract_strided_slice %1 {offsets = [0, 0], sizes = [57, 32], strides = [1, 1]} : vector<64x32xf32> to vector<57x32xf32>
    %108 = tpu.concatenate %106, %107 in 0 : vector<7x32xf32>, vector<57x32xf32> -> vector<64x32xf32>
    %109 = vector.extract_strided_slice %65 {offsets = [2, 0], sizes = [1, 32], strides = [1, 1]} : vector<10x32xf32> to vector<1x32xf32>
    %110 = vector.broadcast %109 : vector<1x32xf32> to vector<64x32xf32>
    %111 = arith.mulf %108, %110 : vector<64x32xf32>
    %c7_i32 = arith.constant 7 : i32
    %112 = vector.broadcast %c7_i32 : i32 to vector<64x1xi32>
    %113 = arith.cmpi slt, %85, %112 : vector<64x1xi32>
    %cst_36 = arith.constant 0.000000e+00 : f32
    %114 = vector.shape_cast %113 : vector<64x1xi1> to vector<64x1xi1>
    %115 = vector.broadcast %114 : vector<64x1xi1> to vector<64x32xi1>
    %116 = vector.broadcast %cst_36 : f32 to vector<64x32xf32>
    %117 = arith.select %115, %111, %116 : vector<64x32xi1>, vector<64x32xf32>
    %118 = arith.addf %105, %117 : vector<64x32xf32>
    %cst_37 = arith.constant 0.000000e+00 : f32
    %119 = vector.broadcast %cst_37 : f32 to vector<1x32xf32>
    %120 = vector.extract_strided_slice %1 {offsets = [0, 0], sizes = [63, 32], strides = [1, 1]} : vector<64x32xf32> to vector<63x32xf32>
    %121 = tpu.concatenate %119, %120 in 0 : vector<1x32xf32>, vector<63x32xf32> -> vector<64x32xf32>
    %122 = vector.extract_strided_slice %65 {offsets = [3, 0], sizes = [1, 32], strides = [1, 1]} : vector<10x32xf32> to vector<1x32xf32>
    %123 = vector.broadcast %122 : vector<1x32xf32> to vector<64x32xf32>
    %124 = arith.mulf %121, %123 : vector<64x32xf32>
    %c1_i32_38 = arith.constant 1 : i32
    %125 = vector.broadcast %c1_i32_38 : i32 to vector<64x1xi32>
    %126 = arith.cmpi sge, %85, %125 : vector<64x1xi32>
    %cst_39 = arith.constant 0.000000e+00 : f32
    %127 = vector.shape_cast %126 : vector<64x1xi1> to vector<64x1xi1>
    %128 = vector.broadcast %127 : vector<64x1xi1> to vector<64x32xi1>
    %129 = vector.broadcast %cst_39 : f32 to vector<64x32xf32>
    %130 = arith.select %128, %124, %129 : vector<64x32xi1>, vector<64x32xf32>
    %131 = arith.addf %118, %130 : vector<64x32xf32>
    %132 = vector.extract_strided_slice %65 {offsets = [4, 0], sizes = [1, 32], strides = [1, 1]} : vector<10x32xf32> to vector<1x32xf32>
    %133 = vector.broadcast %132 : vector<1x32xf32> to vector<64x32xf32>
    %134 = arith.mulf %1, %133 : vector<64x32xf32>
    %135 = arith.addf %131, %134 : vector<64x32xf32>
    %136 = vector.extract_strided_slice %1 {offsets = [1, 0], sizes = [63, 32], strides = [1, 1]} : vector<64x32xf32> to vector<63x32xf32>
    %cst_40 = arith.constant 0.000000e+00 : f32
    %137 = vector.broadcast %cst_40 : f32 to vector<1x32xf32>
    %138 = tpu.concatenate %136, %137 in 0 : vector<63x32xf32>, vector<1x32xf32> -> vector<64x32xf32>
    %139 = vector.extract_strided_slice %65 {offsets = [5, 0], sizes = [1, 32], strides = [1, 1]} : vector<10x32xf32> to vector<1x32xf32>
    %140 = vector.broadcast %139 : vector<1x32xf32> to vector<64x32xf32>
    %141 = arith.mulf %138, %140 : vector<64x32xf32>
    %c7_i32_41 = arith.constant 7 : i32
    %142 = vector.broadcast %c7_i32_41 : i32 to vector<64x1xi32>
    %143 = arith.cmpi slt, %85, %142 : vector<64x1xi32>
    %cst_42 = arith.constant 0.000000e+00 : f32
    %144 = vector.shape_cast %143 : vector<64x1xi1> to vector<64x1xi1>
    %145 = vector.broadcast %144 : vector<64x1xi1> to vector<64x32xi1>
    %146 = vector.broadcast %cst_42 : f32 to vector<64x32xf32>
    %147 = arith.select %145, %141, %146 : vector<64x32xi1>, vector<64x32xf32>
    %148 = arith.addf %135, %147 : vector<64x32xf32>
    %149 = vector.extract_strided_slice %1 {offsets = [7, 0], sizes = [57, 32], strides = [1, 1]} : vector<64x32xf32> to vector<57x32xf32>
    %cst_43 = arith.constant 0.000000e+00 : f32
    %150 = vector.broadcast %cst_43 : f32 to vector<7x32xf32>
    %151 = tpu.concatenate %149, %150 in 0 : vector<57x32xf32>, vector<7x32xf32> -> vector<64x32xf32>
    %152 = vector.extract_strided_slice %65 {offsets = [6, 0], sizes = [1, 32], strides = [1, 1]} : vector<10x32xf32> to vector<1x32xf32>
    %153 = vector.broadcast %152 : vector<1x32xf32> to vector<64x32xf32>
    %154 = arith.mulf %151, %153 : vector<64x32xf32>
    %c1_i32_44 = arith.constant 1 : i32
    %155 = vector.broadcast %c1_i32_44 : i32 to vector<64x1xi32>
    %156 = arith.cmpi sge, %85, %155 : vector<64x1xi32>
    %cst_45 = arith.constant 0.000000e+00 : f32
    %157 = vector.shape_cast %156 : vector<64x1xi1> to vector<64x1xi1>
    %158 = vector.broadcast %157 : vector<64x1xi1> to vector<64x32xi1>
    %159 = vector.broadcast %cst_45 : f32 to vector<64x32xf32>
    %160 = arith.select %158, %154, %159 : vector<64x32xi1>, vector<64x32xf32>
    %161 = arith.addf %148, %160 : vector<64x32xf32>
    %162 = vector.extract_strided_slice %1 {offsets = [8, 0], sizes = [56, 32], strides = [1, 1]} : vector<64x32xf32> to vector<56x32xf32>
    %cst_46 = arith.constant 0.000000e+00 : f32
    %163 = vector.broadcast %cst_46 : f32 to vector<8x32xf32>
    %164 = tpu.concatenate %162, %163 in 0 : vector<56x32xf32>, vector<8x32xf32> -> vector<64x32xf32>
    %165 = vector.extract_strided_slice %65 {offsets = [7, 0], sizes = [1, 32], strides = [1, 1]} : vector<10x32xf32> to vector<1x32xf32>
    %166 = vector.broadcast %165 : vector<1x32xf32> to vector<64x32xf32>
    %167 = arith.mulf %164, %166 : vector<64x32xf32>
    %168 = arith.addf %161, %167 : vector<64x32xf32>
    %169 = vector.extract_strided_slice %1 {offsets = [9, 0], sizes = [55, 32], strides = [1, 1]} : vector<64x32xf32> to vector<55x32xf32>
    %cst_47 = arith.constant 0.000000e+00 : f32
    %170 = vector.broadcast %cst_47 : f32 to vector<9x32xf32>
    %171 = tpu.concatenate %169, %170 in 0 : vector<55x32xf32>, vector<9x32xf32> -> vector<64x32xf32>
    %172 = vector.extract_strided_slice %65 {offsets = [8, 0], sizes = [1, 32], strides = [1, 1]} : vector<10x32xf32> to vector<1x32xf32>
    %173 = vector.broadcast %172 : vector<1x32xf32> to vector<64x32xf32>
    %174 = arith.mulf %171, %173 : vector<64x32xf32>
    %c7_i32_48 = arith.constant 7 : i32
    %175 = vector.broadcast %c7_i32_48 : i32 to vector<64x1xi32>
    %176 = arith.cmpi slt, %85, %175 : vector<64x1xi32>
    %cst_49 = arith.constant 0.000000e+00 : f32
    %177 = vector.shape_cast %176 : vector<64x1xi1> to vector<64x1xi1>
    %178 = vector.broadcast %177 : vector<64x1xi1> to vector<64x32xi1>
    %179 = vector.broadcast %cst_49 : f32 to vector<64x32xf32>
    %180 = arith.select %178, %174, %179 : vector<64x32xi1>, vector<64x32xf32>
    %181 = arith.addf %168, %180 : vector<64x32xf32>
    %c0_50 = arith.constant 0 : index
    %c0_51 = arith.constant 0 : index
    %c0_52 = arith.constant 0 : index
    %182 = vector.load %arg9[%c0_50, %c0_51, %c0_52] : memref<1x64x32xf32, #tpu.memory_space<vmem>>, vector<1x64x32xf32>
    %183 = vector.shape_cast %182 : vector<1x64x32xf32> to vector<64x32xf32>
    %184 = vector.shape_cast %181 : vector<64x32xf32> to vector<1x64x32xf32>
    tpu.vector_store %arg9[%c0_50, %c0_51, %c0_52], %184 {strides = array<i32>} : memref<1x64x32xf32, #tpu.memory_space<vmem>>, vector<1x64x32xf32>,
    return
  }
  func.func @transform_0(%arg0: i32) -> (i32, i32, i32) {
    %c0_i32 = arith.constant 0 : i32
    %c0_i32_0 = arith.constant 0 : i32
    %c0_i32_1 = arith.constant 0 : i32
    return %arg0, %c0_i32, %c0_i32_0 : i32, i32, i32
  }
  func.func @transform_1(%arg0: i32) -> (i32, i32) {
    %c0_i32 = arith.constant 0 : i32
    %c0_i32_0 = arith.constant 0 : i32
    %c0_i32_1 = arith.constant 0 : i32
    return %c0_i32, %c0_i32_0 : i32, i32
  }
  func.func @transform_2(%arg0: i32) -> (i32, i32) {
    %c0_i32 = arith.constant 0 : i32
    %c0_i32_0 = arith.constant 0 : i32
    %c0_i32_1 = arith.constant 0 : i32
    return %c0_i32, %c0_i32_0 : i32, i32
  }
  func.func @transform_3(%arg0: i32) -> (i32, i32) {
    %c0_i32 = arith.constant 0 : i32
    %c0_i32_0 = arith.constant 0 : i32
    %c0_i32_1 = arith.constant 0 : i32
    return %c0_i32, %c0_i32_0 : i32, i32
  }
  func.func @transform_4(%arg0: i32) -> (i32, i32) {
    %c0_i32 = arith.constant 0 : i32
    %c0_i32_0 = arith.constant 0 : i32
    %c0_i32_1 = arith.constant 0 : i32
    return %c0_i32, %c0_i32_0 : i32, i32
  }
  func.func @transform_5(%arg0: i32) -> (i32, i32) {
    %c0_i32 = arith.constant 0 : i32
    %c0_i32_0 = arith.constant 0 : i32
    %c0_i32_1 = arith.constant 0 : i32
    return %c0_i32, %c0_i32_0 : i32, i32
  }
  func.func @transform_6(%arg0: i32) -> (i32, i32) {
    %c0_i32 = arith.constant 0 : i32
    %c0_i32_0 = arith.constant 0 : i32
    %c0_i32_1 = arith.constant 0 : i32
    return %c0_i32, %c0_i32_0 : i32, i32
  }
  func.func @transform_7(%arg0: i32) -> (i32, i32) {
    %c0_i32 = arith.constant 0 : i32
    %c0_i32_0 = arith.constant 0 : i32
    %c0_i32_1 = arith.constant 0 : i32
    return %c0_i32, %c0_i32_0 : i32, i32
  }
  func.func @transform_8(%arg0: i32) -> (i32, i32, i32) {
    %c0_i32 = arith.constant 0 : i32
    %c0_i32_0 = arith.constant 0 : i32
    %c0_i32_1 = arith.constant 0 : i32
    return %arg0, %c0_i32, %c0_i32_0 : i32, i32, i32
  }
}

</mosaic_0001>

<llo_original>
// kernel: tpu_custom_call.1
$region0: #{tpu_custom_call.1}
  #allocation0 [shape = 'u32[]', space=smem, size = 0x4, offset = 0x4, fixed_abs, tag = 'smem constant byte address 0x4 - core index']
  #allocation1 [shape = 'u32[144,128]{1,0:T(1,128)}', space=vmem, size = 0x12000, scoped, tag = 'internal scratch']
  %s0 = inlined_call_operand.vmem [shape: f32[2,64,32], index: 0, kind: input, shape index: {}]
  %s1 = inlined_call_operand.vmem [shape: bf16[32,64], index: 1, kind: input, shape index: {}]
  %s2 = inlined_call_operand.vmem [shape: f32[1,64], index: 2, kind: input, shape index: {}]
  %s3 = inlined_call_operand.vmem [shape: f32[64,32], index: 3, kind: input, shape index: {}]
  %s4 = inlined_call_operand.vmem [shape: f32[16,32], index: 4, kind: input, shape index: {}]
  %s5 = inlined_call_operand.vmem [shape: f32[32,4], index: 5, kind: input, shape index: {}]
  %s6 = inlined_call_operand.vmem [shape: f32[4,32], index: 6, kind: input, shape index: {}]
  %s7 = inlined_call_operand.vmem [shape: f32[10,32], index: 7, kind: input, shape index: {}]
  %s8 = inlined_call_operand.vmem [shape: f32[2,64,32], index: 8, kind: output, shape index: {}]
  %s9 = sld [smem:[#allocation0]]
  $region65: #{tpu_custom_call.1} parent=0
    _
  %s11 = ssub.s32 1, %s9
  %s12 = scalar_select 0, %s11, %s9
  loop: start=0, step=1, limit=4
  $region2: #{tpu_custom_call.1} parent=0 // loop_pre_header
    _
  $region3: #{tpu_custom_call.1} parent=0 // loop_header
    %s14 = sphi 0, %s18
    %p15 = scmp.ge.s32.totalorder %s14, 4
    %s24 = sphi 0, %s26
    %s27 = sphi 0, %s24
    %s28 = sphi 0, %s27
    %s44 = sphi 0, %s28
    %s48 = sphi 0, %s48
    %s50 = sphi 0, %s48
    %s51 = sphi 0, %s50
    %s65 = sphi 0, %s51
    %s69 = sphi 0, %s69
    %s71 = sphi 0, %s69
    %s72 = sphi 0, %s71
    %s86 = sphi 0, %s72
    %s90 = sphi 0, %s90
    %s92 = sphi 0, %s90
    %s93 = sphi 0, %s92
    %s107 = sphi 0, %s93
    %s111 = sphi 0, %s111
    %s113 = sphi 0, %s111
    %s114 = sphi 0, %s113
    %s128 = sphi 0, %s114
    %s132 = sphi 0, %s132
    %s134 = sphi 0, %s132
    %s135 = sphi 0, %s134
    %s149 = sphi 0, %s135
    %s153 = sphi 0, %s153
    %s155 = sphi 0, %s153
    %s156 = sphi 0, %s155
    %s170 = sphi 0, %s156
    %s174 = sphi 0, %s174
    %s176 = sphi 0, %s174
    %s177 = sphi 0, %s176
    %s191 = sphi 0, %s177
    %s197 = sphi 0, %s199
    %s200 = sphi 0, %s197
    %s201 = sphi 0, %s200
    %s217 = sphi 0, %s201
  $region4: #{tpu_custom_call.1} parent=0 // loop_header_branch
    %17 = sbr.rel (%p15) target = $region8
  $region5: #{tpu_custom_call.1} parent=0 // loop_body
    %s19 = ssub.s32 %s14, 1
    %s20 = ssub.s32 %s14, 2
    %s21 = sadd.s32 %s14, 1
    %s22 = ssub.s32 %s14, %s21
    %p23 = scmp.eq.s32.totalorder %s22, 0
    %s25 = sadd.s32 %s24, 1
    %s26 = scalar_select %p23, %s24, %s25
    %p29 = pneg %p23
    %p30 = scmp.eq.s32.totalorder %s14, 1
    %p31 = por %p29, %p30
    %p32 = scmp.ne.s32.totalorder %s24, %s27
    %p33 = scmp.eq.s32.totalorder %s14, 0
    %p34 = por %p32, %p33
    %p35 = scmp.ne.s32.totalorder %s24, %s27
    %p36 = scmp.eq.s32.totalorder %s19, 1
    %p37 = por %p35, %p36
    %p38 = scmp.ne.s32.totalorder %s27, %s28
    %p39 = scmp.eq.s32.totalorder %s19, 0
    %p40 = por %p38, %p39
    %p41 = scmp.ne.s32.totalorder %s27, %s28
    %p42 = scmp.eq.s32.totalorder %s20, 1
    %p43 = por %p41, %p42
    %p45 = scmp.ne.s32.totalorder %s28, %s44
    %p46 = scmp.eq.s32.totalorder %s20, 0
    %p47 = por %p45, %p46
    %s49 = sadd.s32 %s48, 1
    %p52 = scmp.eq.s32.totalorder %s14, 1
    %p53 = scmp.ne.s32.totalorder %s48, %s50
    %p54 = scmp.eq.s32.totalorder %s14, 0
    %p55 = por %p53, %p54
    %p56 = scmp.ne.s32.totalorder %s48, %s50
    %p57 = scmp.eq.s32.totalorder %s19, 1
    %p58 = por %p56, %p57
    %p59 = scmp.ne.s32.totalorder %s50, %s51
    %p60 = scmp.eq.s32.totalorder %s19, 0
    %p61 = por %p59, %p60
    %p62 = scmp.ne.s32.totalorder %s50, %s51
    %p63 = scmp.eq.s32.totalorder %s20, 1
    %p64 = por %p62, %p63
    %p66 = scmp.ne.s32.totalorder %s51, %s65
    %p67 = scmp.eq.s32.totalorder %s20, 0
    %p68 = por %p66, %p67
    %s70 = sadd.s32 %s69, 1
    %p73 = scmp.eq.s32.totalorder %s14, 1
    %p74 = scmp.ne.s32.totalorder %s69, %s71
    %p75 = scmp.eq.s32.totalorder %s14, 0
    %p76 = por %p74, %p75
    %p77 = scmp.ne.s32.totalorder %s69, %s71
    %p78 = scmp.eq.s32.totalorder %s19, 1
    %p79 = por %p77, %p78
    %p80 = scmp.ne.s32.totalorder %s71, %s72
    %p81 = scmp.eq.s32.totalorder %s19, 0
    %p82 = por %p80, %p81
    %p83 = scmp.ne.s32.totalorder %s71, %s72
    %p84 = scmp.eq.s32.totalorder %s20, 1
    %p85 = por %p83, %p84
    %p87 = scmp.ne.s32.totalorder %s72, %s86
    %p88 = scmp.eq.s32.totalorder %s20, 0
    %p89 = por %p87, %p88
    %s91 = sadd.s32 %s90, 1
    %p94 = scmp.eq.s32.totalorder %s14, 1
    %p95 = scmp.ne.s32.totalorder %s90, %s92
    %p96 = scmp.eq.s32.totalorder %s14, 0
    %p97 = por %p95, %p96
    %p98 = scmp.ne.s32.totalorder %s90, %s92
    %p99 = scmp.eq.s32.totalorder %s19, 1
    %p100 = por %p98, %p99
    %p101 = scmp.ne.s32.totalorder %s92, %s93
    %p102 = scmp.eq.s32.totalorder %s19, 0
    %p103 = por %p101, %p102
    %p104 = scmp.ne.s32.totalorder %s92, %s93
    %p105 = scmp.eq.s32.totalorder %s20, 1
    %p106 = por %p104, %p105
    %p108 = scmp.ne.s32.totalorder %s93, %s107
    %p109 = scmp.eq.s32.totalorder %s20, 0
    %p110 = por %p108, %p109
    %s112 = sadd.s32 %s111, 1
    %p115 = scmp.eq.s32.totalorder %s14, 1
    %p116 = scmp.ne.s32.totalorder %s111, %s113
    %p117 = scmp.eq.s32.totalorder %s14, 0
    %p118 = por %p116, %p117
    %p119 = scmp.ne.s32.totalorder %s111, %s113
    %p120 = scmp.eq.s32.totalorder %s19, 1
    %p121 = por %p119, %p120
    %p122 = scmp.ne.s32.totalorder %s113, %s114
    %p123 = scmp.eq.s32.totalorder %s19, 0
    %p124 = por %p122, %p123
    %p125 = scmp.ne.s32.totalorder %s113, %s114
    %p126 = scmp.eq.s32.totalorder %s20, 1
    %p127 = por %p125, %p126
    %p129 = scmp.ne.s32.totalorder %s114, %s128
    %p130 = scmp.eq.s32.totalorder %s20, 0
    %p131 = por %p129, %p130
    %s133 = sadd.s32 %s132, 1
    %p136 = scmp.eq.s32.totalorder %s14, 1
    %p137 = scmp.ne.s32.totalorder %s132, %s134
    %p138 = scmp.eq.s32.totalorder %s14, 0
    %p139 = por %p137, %p138
    %p140 = scmp.ne.s32.totalorder %s132, %s134
    %p141 = scmp.eq.s32.totalorder %s19, 1
    %p142 = por %p140, %p141
    %p143 = scmp.ne.s32.totalorder %s134, %s135
    %p144 = scmp.eq.s32.totalorder %s19, 0
    %p145 = por %p143, %p144
    %p146 = scmp.ne.s32.totalorder %s134, %s135
    %p147 = scmp.eq.s32.totalorder %s20, 1
    %p148 = por %p146, %p147
    %p150 = scmp.ne.s32.totalorder %s135, %s149
    %p151 = scmp.eq.s32.totalorder %s20, 0
    %p152 = por %p150, %p151
    %s154 = sadd.s32 %s153, 1
    %p157 = scmp.eq.s32.totalorder %s14, 1
    %p158 = scmp.ne.s32.totalorder %s153, %s155
    %p159 = scmp.eq.s32.totalorder %s14, 0
    %p160 = por %p158, %p159
    %p161 = scmp.ne.s32.totalorder %s153, %s155
    %p162 = scmp.eq.s32.totalorder %s19, 1
    %p163 = por %p161, %p162
    %p164 = scmp.ne.s32.totalorder %s155, %s156
    %p165 = scmp.eq.s32.totalorder %s19, 0
    %p166 = por %p164, %p165
    %p167 = scmp.ne.s32.totalorder %s155, %s156
    %p168 = scmp.eq.s32.totalorder %s20, 1
    %p169 = por %p167, %p168
    %p171 = scmp.ne.s32.totalorder %s156, %s170
    %p172 = scmp.eq.s32.totalorder %s20, 0
    %p173 = por %p171, %p172
    %s175 = sadd.s32 %s174, 1
    %p178 = scmp.eq.s32.totalorder %s14, 1
    %p179 = scmp.ne.s32.totalorder %s174, %s176
    %p180 = scmp.eq.s32.totalorder %s14, 0
    %p181 = por %p179, %p180
    %p182 = scmp.ne.s32.totalorder %s174, %s176
    %p183 = scmp.eq.s32.totalorder %s19, 1
    %p184 = por %p182, %p183
    %p185 = scmp.ne.s32.totalorder %s176, %s177
    %p186 = scmp.eq.s32.totalorder %s19, 0
    %p187 = por %p185, %p186
    %p188 = scmp.ne.s32.totalorder %s176, %s177
    %p189 = scmp.eq.s32.totalorder %s20, 1
    %p190 = por %p188, %p189
    %p192 = scmp.ne.s32.totalorder %s177, %s191
    %p193 = scmp.eq.s32.totalorder %s20, 0
    %p194 = por %p192, %p193
    %s195 = ssub.s32 %s14, %s21
    %p196 = scmp.eq.s32.totalorder %s195, 0
    %s198 = sadd.s32 %s197, 1
    %s199 = scalar_select %p196, %s197, %s198
    %p202 = pneg %p196
    %p203 = scmp.eq.s32.totalorder %s14, 1
    %p204 = por %p202, %p203
    %p205 = scmp.ne.s32.totalorder %s197, %s200
    %p206 = scmp.eq.s32.totalorder %s14, 0
    %p207 = por %p205, %p206
    %p208 = scmp.ne.s32.totalorder %s197, %s200
    %p209 = scmp.eq.s32.totalorder %s19, 1
    %p210 = por %p208, %p209
    %p211 = scmp.ne.s32.totalorder %s200, %s201
    %p212 = scmp.eq.s32.totalorder %s19, 0
    %p213 = por %p211, %p212
    %p214 = scmp.ne.s32.totalorder %s200, %s201
    %p215 = scmp.eq.s32.totalorder %s20, 1
    %p216 = por %p214, %p215
    %p218 = scmp.ne.s32.totalorder %s201, %s217
    %p219 = scmp.eq.s32.totalorder %s20, 0
    %p220 = por %p218, %p219
    %p221 = scmp.le.s32.totalorder 1, %s14
    %p222 = scmp.lt.s32.totalorder %s14, 3
    %p223 = pnand %p221, %p222
    %p224 = pneg %p223
    // Predicated region
    $region9: #{tpu_custom_call.1} parent=5 // pred_check
      _
    $region10: #{tpu_custom_call.1} parent=5 // pred_check_branch
      %226 = sbr.rel (%p223) target = $region12
    $region11: #{tpu_custom_call.1} parent=5 // pred_region
      %s227 = ssub.s32 %s14, 1
      // Predicated region
      $region13: #{tpu_custom_call.1} parent=11 // pred_check
        %p228 = pneg %p61
      $region14: #{tpu_custom_call.1} parent=11 // pred_check_branch
        %230 = sbr.rel (%p228) target = $region16
      $region15: #{tpu_custom_call.1} parent=11 // pred_region
        _
      $region16: #{tpu_custom_call.1} parent=11 // pred_fallthru
        _
      // Predicated region
      $region17: #{tpu_custom_call.1} parent=11 // pred_check
        %p231 = pneg %p82
      $region18: #{tpu_custom_call.1} parent=11 // pred_check_branch
        %233 = sbr.rel (%p231) target = $region20
      $region19: #{tpu_custom_call.1} parent=11 // pred_region
        _
      $region20: #{tpu_custom_call.1} parent=11 // pred_fallthru
        _
      // Predicated region
      $region21: #{tpu_custom_call.1} parent=11 // pred_check
        %p234 = pneg %p103
      $region22: #{tpu_custom_call.1} parent=11 // pred_check_branch
        %236 = sbr.rel (%p234) target = $region24
      $region23: #{tpu_custom_call.1} parent=11 // pred_region
        _
      $region24: #{tpu_custom_call.1} parent=11 // pred_fallthru
        _
      // Predicated region
      $region25: #{tpu_custom_call.1} parent=11 // pred_check
        %p237 = pneg %p124
      $region26: #{tpu_custom_call.1} parent=11 // pred_check_branch
        %239 = sbr.rel (%p237) target = $region28
      $region27: #{tpu_custom_call.1} parent=11 // pred_region
        _
      $region28: #{tpu_custom_call.1} parent=11 // pred_fallthru
        _
      // Predicated region
      $region29: #{tpu_custom_call.1} parent=11 // pred_check
        %p240 = pneg %p145
      $region30: #{tpu_custom_call.1} parent=11 // pred_check_branch
        %242 = sbr.rel (%p240) target = $region32
      $region31: #{tpu_custom_call.1} parent=11 // pred_region
        _
      $region32: #{tpu_custom_call.1} parent=11 // pred_fallthru
        _
      // Predicated region
      $region33: #{tpu_custom_call.1} parent=11 // pred_check
        %p243 = pneg %p166
      $region34: #{tpu_custom_call.1} parent=11 // pred_check_branch
        %245 = sbr.rel (%p243) target = $region36
      $region35: #{tpu_custom_call.1} parent=11 // pred_region
        _
      $region36: #{tpu_custom_call.1} parent=11 // pred_fallthru
        _
      // Predicated region
      $region37: #{tpu_custom_call.1} parent=11 // pred_check
        %p246 = pneg %p187
      $region38: #{tpu_custom_call.1} parent=11 // pred_check_branch
        %248 = sbr.rel (%p246) target = $region40
      $region39: #{tpu_custom_call.1} parent=11 // pred_region
        _
      $region40: #{tpu_custom_call.1} parent=11 // pred_fallthru
        _
    $region12: #{tpu_custom_call.1} parent=5 // pred_fallthru
      _
    %p249 = scmp.lt.s32.totalorder %s14, 2
    // Predicated region
    $region41: #{tpu_custom_call.1} parent=5 // pred_check
      %p250 = pneg %p249
    $region42: #{tpu_custom_call.1} parent=5 // pred_check_branch
      %252 = sbr.rel (%p250) target = $region44
    $region43: #{tpu_custom_call.1} parent=5 // pred_region
      // Predicated region
      $region45: #{tpu_custom_call.1} parent=43 // pred_check
        %p253 = pneg %p34
      $region46: #{tpu_custom_call.1} parent=43 // pred_check_branch
        %255 = sbr.rel (%p253) target = $region48
      $region47: #{tpu_custom_call.1} parent=43 // pred_region
        %p256 = scmp.lt.s32.totalorder %s14, 1
        %s257 = scalar_select %p256, %s14, 1
        %s258 = smul.addr %s257, 8
        %s259 = smul.addr %s258, 8
        %s260 = scalar_lea.vmem %s0, %s259
      $region48: #{tpu_custom_call.1} parent=43 // pred_fallthru
        _
    $region44: #{tpu_custom_call.1} parent=5 // pred_fallthru
      _
    %p261 = scmp.le.s32.totalorder 1, %s14
    %p262 = scmp.lt.s32.totalorder %s14, 3
    %p263 = pnand %p261, %p262
    %p264 = pneg %p263
    // Predicated region
    $region49: #{tpu_custom_call.1} parent=5 // pred_check
      _
    $region50: #{tpu_custom_call.1} parent=5 // pred_check_branch
      %266 = sbr.rel (%p263) target = $region52
    $region51: #{tpu_custom_call.1} parent=5 // pred_region
      %s267 = ssub.s32 %s14, 1
      %p268 = scmp.lt.s32.totalorder %s19, 1
      %s269 = scalar_select %p268, %s19, 1
      %s270 = smul.addr %s269, 8
      %s271 = smul.addr %s270, 8
      %s272 = scalar_lea.vmem %s0, %s271
      %p273 = pneg %p40
      %p274 = pneg %p37
      %p275 = pneg %p61
      %p276 = pneg %p58
      %p277 = pneg %p82
      %p278 = pneg %p79
      %p279 = pneg %p103
      %p280 = pneg %p100
      %p281 = pneg %p124
      %p282 = pneg %p121
      %p283 = pneg %p145
      %p284 = pneg %p142
      %p285 = pneg %p166
      %p286 = pneg %p163
      %p287 = pneg %p187
      %p288 = pneg %p184
      %p289 = pneg %p213
      %p290 = pneg %p210
      %p291 = scmp.lt.s32.totalorder %s19, 1
      %s292 = scalar_select %p291, %s19, 1
      %s293 = smul.addr %s292, 8
      %s294 = smul.addr %s293, 8
      %s295 = scalar_lea.vmem %s8, %s294
      %p296 = scmp.lt.s32.totalorder %s19, 1
      %s297 = scalar_select %p296, %s19, 1
      %s298 = smul.addr %s297, 8
      %s299 = smul.addr %s298, 8
      %s300 = scalar_lea.vmem %s0, %s299
      %p301 = scmp.lt.s32.totalorder %s19, 1
      %s302 = scalar_select %p301, %s19, 1
      %s303 = smul.addr %s302, 8
      %s304 = smul.addr %s303, 8
      %s305 = scalar_lea.vmem %s8, %s304
      %v307 = vld [vmem:[%s300] sm:$0xff]
      %v308 = vld [vmem:[%s300 + $0x8] sm:$0xff]
      %v309 = vld [vmem:[%s300 + $0x10] sm:$0xff]
      %v310 = vld [vmem:[%s300 + $0x18] sm:$0xff]
      %v311 = vld [vmem:[%s300 + $0x20] sm:$0xff]
      %v312 = vld [vmem:[%s300 + $0x28] sm:$0xff]
      %v313 = vld [vmem:[%s300 + $0x30] sm:$0xff]
      %v314 = vld [vmem:[%s300 + $0x38] sm:$0xff]
      %v315 = vpack.c.bf16 %v308, %v307
      %v316 = vpack.c.bf16 %v310, %v309
      %v317 = vpack.c.bf16 %v312, %v311
      %v318 = vpack.c.bf16 %v314, %v313
      %v319 = vld [vmem:[%s1] sm:$0xf]
      %v320 = vld [vmem:[%s1 + $0x4] sm:$0xf]
      %v321 = vld [vmem:[%s1 + $0x8] sm:$0xf]
      %v322 = vld [vmem:[%s1 + $0xc] sm:$0xf]
      %v323 = vld [vmem:[%s2] sm:$0x1]
      %v325 = vlaneseq
      %v326 = vshrl.u32 %v325, 7
      %v327 = vsub.s32 0, %v326
      %v328 = vrot.slane %v323, %v327
      %v334 = vunpack.c.l.b16 %v319
      %v335 = vunpack.c.l.b16 %v320
      %v336 = vunpack.c.l.b16 %v321
      %v337 = vunpack.c.l.b16 %v322
      %v338 = vpack.c.b16 %v335, %v334
      %v339 = vpack.c.b16 %v337, %v336
      %vm342 = vcmask 261120
      %v344 = vsel %vm342, %v315, 0
      %v347 = vsel %vm342, %v316, 0
      %v350 = vsel %vm342, %v317, 0
      %v353 = vsel %vm342, %v318, 0
      %355 = vmatprep.subr.bf16.mxu0 0
      %356 = vmatpush1.bf16.msra.mxu0 %v338
      %357 = vmatprep.subr.bf16.mxu0 0
      %358 = vmatpush1.bf16.msra.mxu0 %v339
      %359 = vmatprep.subr.bf16.mxu0 0
      %360 = vmatpush1.bf16.msra.mxu0 0
      %361 = vmatprep.subr.bf16.mxu0 0
      %362 = vmatpush1.bf16.msra.mxu0 0
      %363 = vmatprep.subr.bf16.mxu0 0
      %364 = vmatpush1.bf16.msra.mxu0 0
      %365 = vmatprep.subr.bf16.mxu0 0
      %366 = vmatpush1.bf16.msra.mxu0 0
      %367 = vmatprep.subr.bf16.mxu0 0
      %368 = vmatpush1.bf16.msra.mxu0 0
      %369 = vmatprep.subr.bf16.mxu0 0
      %370 = vmatpush1.bf16.msra.mxu0 0
      %371 = vmatprep.subr.bf16.mxu0 0
      %372 = vmatpush1.bf16.msra.mxu0 0
      %373 = vmatprep.subr.bf16.mxu0 0
      %374 = vmatpush1.bf16.msra.mxu0 0
      %375 = vmatprep.subr.bf16.mxu0 0
      %376 = vmatpush1.bf16.msra.mxu0 0
      %377 = vmatprep.subr.bf16.mxu0 0
      %378 = vmatpush1.bf16.msra.mxu0 0
      %379 = vmatprep.subr.bf16.mxu0 0
      %380 = vmatpush1.bf16.msra.mxu0 0
      %381 = vmatprep.subr.bf16.mxu0 0
      %382 = vmatpush1.bf16.msra.mxu0 0
      %383 = vmatprep.subr.bf16.mxu0 0
      %384 = vmatpush1.bf16.msra.mxu0 0
      %385 = vmatprep.subr.bf16.mxu0 0
      %386 = vmatpush1.bf16.msra.mxu0 0
      %387 = vmatprep.mubr.bf16.mxu0 0
      %388 = vmatmul.mubr.bf16.gmra.mrb[0].mxu0 %v344
      %v389 = vpop.f32.mrb[0].mxu0
      %v390 = vadd.f32 %v328, %v389
      %v391 = vpop.f32.mrb[0].mxu0
      %v392 = vpop.f32.mrb[0].mxu0
      %v393 = vadd.f32 %v328, %v392
      %v394 = vpop.f32.mrb[0].mxu0
      %395 = vmatprep.mubr.bf16.mxu0 0
      %396 = vmatmul.mubr.bf16.gmra.mrb[0].mxu0 %v347
      %v397 = vpop.f32.mrb[0].mxu0
      %v398 = vadd.f32 %v328, %v397
      %v399 = vpop.f32.mrb[0].mxu0
      %v400 = vpop.f32.mrb[0].mxu0
      %v401 = vadd.f32 %v328, %v400
      %v402 = vpop.f32.mrb[0].mxu0
      %403 = vmatprep.mubr.bf16.mxu0 0
      %404 = vmatmul.mubr.bf16.gmra.mrb[0].mxu0 %v350
      %v405 = vpop.f32.mrb[0].mxu0
      %v406 = vadd.f32 %v328, %v405
      %v407 = vpop.f32.mrb[0].mxu0
      %v408 = vpop.f32.mrb[0].mxu0
      %v409 = vadd.f32 %v328, %v408
      %v410 = vpop.f32.mrb[0].mxu0
      %411 = vmatprep.mubr.bf16.mxu0 0
      %412 = vmatmul.mubr.bf16.gmra.mrb[0].mxu0 %v353
      %v413 = vpop.f32.mrb[0].mxu0
      %v414 = vadd.f32 %v328, %v413
      %v415 = vpop.f32.mrb[0].mxu0
      %v416 = vpop.f32.mrb[0].mxu0
      %v417 = vadd.f32 %v328, %v416
      %v418 = vpop.f32.mrb[0].mxu0
      %419 = vdwg.mxu0
      %vm420 = vcmp.gt.f32.partialorder %v390, 0.0
      %vm421 = vcmp.gt.f32.partialorder %v393, 0.0
      %vm422 = vcmp.gt.f32.partialorder %v398, 0.0
      %vm423 = vcmp.gt.f32.partialorder %v401, 0.0
      %vm424 = vcmp.gt.f32.partialorder %v406, 0.0
      %vm425 = vcmp.gt.f32.partialorder %v409, 0.0
      %vm426 = vcmp.gt.f32.partialorder %v414, 0.0
      %vm427 = vcmp.gt.f32.partialorder %v417, 0.0
      %v428 = vadd.f32 %v390, 1.0
      %v429 = vadd.f32 %v393, 1.0
      %v430 = vadd.f32 %v398, 1.0
      %v431 = vadd.f32 %v401, 1.0
      %v432 = vadd.f32 %v406, 1.0
      %v433 = vadd.f32 %v409, 1.0
      %v434 = vadd.f32 %v414, 1.0
      %v435 = vadd.f32 %v417, 1.0
      %v436 = vmin.f32 %v390, 0.0
      %v437 = vmin.f32 %v393, 0.0
      %v438 = vmin.f32 %v398, 0.0
      %v439 = vmin.f32 %v401, 0.0
      %v440 = vmin.f32 %v406, 0.0
      %v441 = vmin.f32 %v409, 0.0
      %v442 = vmin.f32 %v414, 0.0
      %v443 = vmin.f32 %v417, 0.0
      %v444 = vmul.f32 %v436, 1.442695
      %v445 = vpow.pop %v444
      %v446 = vmul.f32 %v437, 1.442695
      %v447 = vpow.pop %v446
      %v448 = vmul.f32 %v438, 1.442695
      %v449 = vpow.pop %v448
      %v450 = vmul.f32 %v439, 1.442695
      %v451 = vpow.pop %v450
      %v452 = vmul.f32 %v440, 1.442695
      %v453 = vpow.pop %v452
      %v454 = vmul.f32 %v441, 1.442695
      %v455 = vpow.pop %v454
      %v456 = vmul.f32 %v442, 1.442695
      %v457 = vpow.pop %v456
      %v458 = vmul.f32 %v443, 1.442695
      %v459 = vpow.pop %v458
      %v460 = vsel %vm420, %v428, %v445
      %v461 = vsel %vm421, %v429, %v447
      %v462 = vsel %vm422, %v430, %v449
      %v463 = vsel %vm423, %v431, %v451
      %v464 = vsel %vm424, %v432, %v453
      %v465 = vsel %vm425, %v433, %v455
      %v466 = vsel %vm426, %v434, %v457
      %v467 = vsel %vm427, %v435, %v459
      %v468 = vld [vmem:[%s3] sm:$0xff]
      %v469 = vld [vmem:[%s3 + $0x8] sm:$0xff]
      %v470 = vld [vmem:[%s3 + $0x10] sm:$0xff]
      %v471 = vld [vmem:[%s3 + $0x18] sm:$0xff]
      %v472 = vld [vmem:[%s3 + $0x20] sm:$0xff]
      %v473 = vld [vmem:[%s3 + $0x28] sm:$0xff]
      %v474 = vld [vmem:[%s3 + $0x30] sm:$0xff]
      %v475 = vld [vmem:[%s3 + $0x38] sm:$0xff]
      %v476 = vmul.f32 %v460, %v468
      %v477 = vmul.f32 %v461, %v469
      %v478 = vmul.f32 %v462, %v470
      %v479 = vmul.f32 %v463, %v471
      %v480 = vmul.f32 %v464, %v472
      %v481 = vmul.f32 %v465, %v473
      %v482 = vmul.f32 %v466, %v474
      %v483 = vmul.f32 %v467, %v475
      %492 = vrot.lane.b32.xlu0 %v476, 112
      %v493 = vpop.permute.xlu0 %492
      %494 = vrot.lane.b32.xlu0 %v477, 112
      %v495 = vpop.permute.xlu0 %494
      %496 = vrot.lane.b32.xlu0 %v478, 112
      %v497 = vpop.permute.xlu0 %496
      %498 = vrot.lane.b32.xlu0 %v479, 112
      %v499 = vpop.permute.xlu0 %498
      %500 = vrot.lane.b32.xlu0 %v480, 112
      %v501 = vpop.permute.xlu0 %500
      %502 = vrot.lane.b32.xlu0 %v481, 112
      %v503 = vpop.permute.xlu0 %502
      %504 = vrot.lane.b32.xlu0 %v482, 112
      %v505 = vpop.permute.xlu0 %504
      %506 = vrot.lane.b32.xlu0 %v483, 112
      %v507 = vpop.permute.xlu0 %506
      %v516 = vsub.f32 %v476, %v493
      %v517 = vsub.f32 %v477, %v495
      %v518 = vsub.f32 %v478, %v497
      %v519 = vsub.f32 %v479, %v499
      %v520 = vsub.f32 %v480, %v501
      %v521 = vsub.f32 %v481, %v503
      %v522 = vsub.f32 %v482, %v505
      %v523 = vsub.f32 %v483, %v507
      %v524 = vpack.c.bf16 %v517, %v516
      %v525 = vpack.c.bf16 %v519, %v518
      %v526 = vpack.c.bf16 %v521, %v520
      %v527 = vpack.c.bf16 %v523, %v522
      %536 = vrot.lane.b32.xlu0 %v468, 16
      %v537 = vpop.permute.xlu0 %536
      %538 = vrot.lane.b32.xlu0 %v469, 16
      %v539 = vpop.permute.xlu0 %538
      %540 = vrot.lane.b32.xlu0 %v470, 16
      %v541 = vpop.permute.xlu0 %540
      %542 = vrot.lane.b32.xlu0 %v471, 16
      %v543 = vpop.permute.xlu0 %542
      %544 = vrot.lane.b32.xlu0 %v472, 16
      %v545 = vpop.permute.xlu0 %544
      %546 = vrot.lane.b32.xlu0 %v473, 16
      %v547 = vpop.permute.xlu0 %546
      %548 = vrot.lane.b32.xlu0 %v474, 16
      %v549 = vpop.permute.xlu0 %548
      %550 = vrot.lane.b32.xlu0 %v475, 16
      %v551 = vpop.permute.xlu0 %550
      %v560 = vmul.f32 %v460, %v537
      %v561 = vmul.f32 %v461, %v539
      %v562 = vmul.f32 %v462, %v541
      %v563 = vmul.f32 %v463, %v543
      %v564 = vmul.f32 %v464, %v545
      %v565 = vmul.f32 %v465, %v547
      %v566 = vmul.f32 %v466, %v549
      %v567 = vmul.f32 %v467, %v551
      %568 = vrot.lane.b32.xlu0 %v468, 112
      %v569 = vpop.permute.xlu0 %568
      %570 = vrot.lane.b32.xlu0 %v469, 112
      %v571 = vpop.permute.xlu0 %570
      %572 = vrot.lane.b32.xlu0 %v470, 112
      %v573 = vpop.permute.xlu0 %572
      %574 = vrot.lane.b32.xlu0 %v471, 112
      %v575 = vpop.permute.xlu0 %574
      %576 = vrot.lane.b32.xlu0 %v472, 112
      %v577 = vpop.permute.xlu0 %576
      %578 = vrot.lane.b32.xlu0 %v473, 112
      %v579 = vpop.permute.xlu0 %578
      %580 = vrot.lane.b32.xlu0 %v474, 112
      %v581 = vpop.permute.xlu0 %580
      %582 = vrot.lane.b32.xlu0 %v475, 112
      %v583 = vpop.permute.xlu0 %582
      %v592 = vmul.f32 %v460, %v569
      %v593 = vmul.f32 %v461, %v571
      %v594 = vmul.f32 %v462, %v573
      %v595 = vmul.f32 %v463, %v575
      %v596 = vmul.f32 %v464, %v577
      %v597 = vmul.f32 %v465, %v579
      %v598 = vmul.f32 %v466, %v581
      %v599 = vmul.f32 %v467, %v583
      %608 = vrot.lane.b32.xlu0 %v592, 16
      %v609 = vpop.permute.xlu0 %608
      %610 = vrot.lane.b32.xlu0 %v593, 16
      %v611 = vpop.permute.xlu0 %610
      %612 = vrot.lane.b32.xlu0 %v594, 16
      %v613 = vpop.permute.xlu0 %612
      %614 = vrot.lane.b32.xlu0 %v595, 16
      %v615 = vpop.permute.xlu0 %614
      %616 = vrot.lane.b32.xlu0 %v596, 16
      %v617 = vpop.permute.xlu0 %616
      %618 = vrot.lane.b32.xlu0 %v597, 16
      %v619 = vpop.permute.xlu0 %618
      %620 = vrot.lane.b32.xlu0 %v598, 16
      %v621 = vpop.permute.xlu0 %620
      %622 = vrot.lane.b32.xlu0 %v599, 16
      %v623 = vpop.permute.xlu0 %622
      %v632 = vadd.f32 %v560, %v609
      %v633 = vadd.f32 %v561, %v611
      %v634 = vadd.f32 %v562, %v613
      %v635 = vadd.f32 %v563, %v615
      %v636 = vadd.f32 %v564, %v617
      %v637 = vadd.f32 %v565, %v619
      %v638 = vadd.f32 %v566, %v621
      %v639 = vadd.f32 %v567, %v623
      %v640 = vpack.c.bf16 %v633, %v632
      %v641 = vpack.c.bf16 %v635, %v634
      %v642 = vpack.c.bf16 %v637, %v636
      %v643 = vpack.c.bf16 %v639, %v638
      %644 = vrot.lane.b32.xlu0 %v468, 32
      %v645 = vpop.permute.xlu0 %644
      %646 = vrot.lane.b32.xlu0 %v469, 32
      %v647 = vpop.permute.xlu0 %646
      %648 = vrot.lane.b32.xlu0 %v470, 32
      %v649 = vpop.permute.xlu0 %648
      %650 = vrot.lane.b32.xlu0 %v471, 32
      %v651 = vpop.permute.xlu0 %650
      %652 = vrot.lane.b32.xlu0 %v472, 32
      %v653 = vpop.permute.xlu0 %652
      %654 = vrot.lane.b32.xlu0 %v473, 32
      %v655 = vpop.permute.xlu0 %654
      %656 = vrot.lane.b32.xlu0 %v474, 32
      %v657 = vpop.permute.xlu0 %656
      %658 = vrot.lane.b32.xlu0 %v475, 32
      %v659 = vpop.permute.xlu0 %658
      %v668 = vmul.f32 %v460, %v645
      %v669 = vmul.f32 %v461, %v647
      %v670 = vmul.f32 %v462, %v649
      %v671 = vmul.f32 %v463, %v651
      %v672 = vmul.f32 %v464, %v653
      %v673 = vmul.f32 %v465, %v655
      %v674 = vmul.f32 %v466, %v657
      %v675 = vmul.f32 %v467, %v659
      %684 = vrot.lane.b32.xlu0 %v668, 112
      %v685 = vpop.permute.xlu0 %684
      %686 = vrot.lane.b32.xlu0 %v669, 112
      %v687 = vpop.permute.xlu0 %686
      %688 = vrot.lane.b32.xlu0 %v670, 112
      %v689 = vpop.permute.xlu0 %688
      %690 = vrot.lane.b32.xlu0 %v671, 112
      %v691 = vpop.permute.xlu0 %690
      %692 = vrot.lane.b32.xlu0 %v672, 112
      %v693 = vpop.permute.xlu0 %692
      %694 = vrot.lane.b32.xlu0 %v673, 112
      %v695 = vpop.permute.xlu0 %694
      %696 = vrot.lane.b32.xlu0 %v674, 112
      %v697 = vpop.permute.xlu0 %696
      %698 = vrot.lane.b32.xlu0 %v675, 112
      %v699 = vpop.permute.xlu0 %698
      %v708 = vsub.f32 %v668, %v685
      %v709 = vsub.f32 %v669, %v687
      %v710 = vsub.f32 %v670, %v689
      %v711 = vsub.f32 %v671, %v691
      %v712 = vsub.f32 %v672, %v693
      %v713 = vsub.f32 %v673, %v695
      %v714 = vsub.f32 %v674, %v697
      %v715 = vsub.f32 %v675, %v699
      %v716 = vpack.c.bf16 %v709, %v708
      %v717 = vpack.c.bf16 %v711, %v710
      %v718 = vpack.c.bf16 %v713, %v712
      %v719 = vpack.c.bf16 %v715, %v714
      %720 = vrot.lane.b32.xlu0 %v468, 48
      %v721 = vpop.permute.xlu0 %720
      %722 = vrot.lane.b32.xlu0 %v469, 48
      %v723 = vpop.permute.xlu0 %722
      %724 = vrot.lane.b32.xlu0 %v470, 48
      %v725 = vpop.permute.xlu0 %724
      %726 = vrot.lane.b32.xlu0 %v471, 48
      %v727 = vpop.permute.xlu0 %726
      %728 = vrot.lane.b32.xlu0 %v472, 48
      %v729 = vpop.permute.xlu0 %728
      %730 = vrot.lane.b32.xlu0 %v473, 48
      %v731 = vpop.permute.xlu0 %730
      %732 = vrot.lane.b32.xlu0 %v474, 48
      %v733 = vpop.permute.xlu0 %732
      %734 = vrot.lane.b32.xlu0 %v475, 48
      %v735 = vpop.permute.xlu0 %734
      %v744 = vmul.f32 %v460, %v721
      %v745 = vmul.f32 %v461, %v723
      %v746 = vmul.f32 %v462, %v725
      %v747 = vmul.f32 %v463, %v727
      %v748 = vmul.f32 %v464, %v729
      %v749 = vmul.f32 %v465, %v731
      %v750 = vmul.f32 %v466, %v733
      %v751 = vmul.f32 %v467, %v735
      %760 = vrot.lane.b32.xlu0 %v560, 16
      %v761 = vpop.permute.xlu0 %760
      %762 = vrot.lane.b32.xlu0 %v561, 16
      %v763 = vpop.permute.xlu0 %762
      %764 = vrot.lane.b32.xlu0 %v562, 16
      %v765 = vpop.permute.xlu0 %764
      %766 = vrot.lane.b32.xlu0 %v563, 16
      %v767 = vpop.permute.xlu0 %766
      %768 = vrot.lane.b32.xlu0 %v564, 16
      %v769 = vpop.permute.xlu0 %768
      %770 = vrot.lane.b32.xlu0 %v565, 16
      %v771 = vpop.permute.xlu0 %770
      %772 = vrot.lane.b32.xlu0 %v566, 16
      %v773 = vpop.permute.xlu0 %772
      %774 = vrot.lane.b32.xlu0 %v567, 16
      %v775 = vpop.permute.xlu0 %774
      %v784 = vadd.f32 %v744, %v761
      %v785 = vadd.f32 %v745, %v763
      %v786 = vadd.f32 %v746, %v765
      %v787 = vadd.f32 %v747, %v767
      %v788 = vadd.f32 %v748, %v769
      %v789 = vadd.f32 %v749, %v771
      %v790 = vadd.f32 %v750, %v773
      %v791 = vadd.f32 %v751, %v775
      %v792 = vpack.c.bf16 %v785, %v784
      %v793 = vpack.c.bf16 %v787, %v786
      %v794 = vpack.c.bf16 %v789, %v788
      %v795 = vpack.c.bf16 %v791, %v790
      %vm796 = vcmask 523520
      %v797 = vsel %vm796, %v460, 0.0
      %v798 = vsel %vm796, %v461, 0.0
      %v799 = vadd.f32 %v797, %v798
      %v800 = vsel %vm796, %v462, 0.0
      %v801 = vadd.f32 %v799, %v800
      %v802 = vsel %vm796, %v463, 0.0
      %v803 = vadd.f32 %v801, %v802
      %v804 = vsel %vm796, %v464, 0.0
      %v805 = vadd.f32 %v803, %v804
      %v806 = vsel %vm796, %v465, 0.0
      %v807 = vadd.f32 %v805, %v806
      %v808 = vsel %vm796, %v466, 0.0
      %v809 = vadd.f32 %v807, %v808
      %v810 = vsel %vm796, %v467, 0.0
      %v811 = vadd.f32 %v809, %v810
      %v812 = vrot.slane %v811, 4
      %v813 = vadd.f32 %v811, %v812
      %v814 = vrot.slane %v813, 2
      %v815 = vadd.f32 %v813, %v814
      %v816 = vrot.slane %v815, 1
      %v817 = vadd.f32 %v815, %v816
      %v818 = vrcp.pop 64.0
      %v819 = vmul.f32 %v817, %v818
      %821 = vrot.lane.b32.xlu0 %v819, 96
      %v822 = vpop.permute.xlu0 %821
      %v824 = vmul.f32 %v460, %v822
      %v825 = vmul.f32 %v461, %v822
      %v826 = vmul.f32 %v462, %v822
      %v827 = vmul.f32 %v463, %v822
      %v828 = vmul.f32 %v464, %v822
      %v829 = vmul.f32 %v465, %v822
      %v830 = vmul.f32 %v466, %v822
      %v831 = vmul.f32 %v467, %v822
      %v832 = vld [vmem:[%s5] sm:$0xff]
      %v833 = vld [vmem:[%s5 + $0x8] sm:$0xff]
      %v834 = vld [vmem:[%s5 + $0x10] sm:$0xff]
      %v835 = vld [vmem:[%s5 + $0x18] sm:$0xff]
      %v837 = vsel %vm342, %v824, 0
      %v840 = vsel %vm342, %v825, 0
      %v843 = vsel %vm342, %v826, 0
      %v846 = vsel %vm342, %v827, 0
      %v849 = vsel %vm342, %v828, 0
      %v852 = vsel %vm342, %v829, 0
      %v855 = vsel %vm342, %v830, 0
      %v858 = vsel %vm342, %v831, 0
      %860 = vmatprep.subr.mxu0 0.0
      %861 = vmatpush1.msra.mxu0 %v832
      %862 = vmatprep.subr.mxu0 0.0
      %863 = vmatpush1.msra.mxu0 %v833
      %864 = vmatprep.subr.mxu0 0.0
      %865 = vmatpush1.msra.mxu0 %v834
      %866 = vmatprep.subr.mxu0 0.0
      %867 = vmatpush1.msra.mxu0 %v835
      %868 = vmatprep.subr.mxu0 0.0
      %869 = vmatpush1.msra.mxu0 0.0
      %870 = vmatprep.subr.mxu0 0.0
      %871 = vmatpush1.msra.mxu0 0.0
      %872 = vmatprep.subr.mxu0 0.0
      %873 = vmatpush1.msra.mxu0 0.0
      %874 = vmatprep.subr.mxu0 0.0
      %875 = vmatpush1.msra.mxu0 0.0
      %876 = vmatprep.subr.mxu0 0.0
      %877 = vmatpush1.msra.mxu0 0.0
      %878 = vmatprep.subr.mxu0 0.0
      %879 = vmatpush1.msra.mxu0 0.0
      %880 = vmatprep.subr.mxu0 0.0
      %881 = vmatpush1.msra.mxu0 0.0
      %882 = vmatprep.subr.mxu0 0.0
      %883 = vmatpush1.msra.mxu0 0.0
      %884 = vmatprep.subr.mxu0 0.0
      %885 = vmatpush1.msra.mxu0 0.0
      %886 = vmatprep.subr.mxu0 0.0
      %887 = vmatpush1.msra.mxu0 0.0
      %888 = vmatprep.subr.mxu0 0.0
      %889 = vmatpush1.msra.mxu0 0.0
      %890 = vmatprep.subr.mxu0 0.0
      %891 = vmatpush1.msra.mxu0 0.0
      %892 = vmatprep.subr.mxu0 0.0
      %893 = vmatpush1.msra.mxu0 0.0
      %894 = vmatprep.subr.mxu0 0.0
      %895 = vmatpush1.msra.mxu0 0.0
      %896 = vmatprep.subr.mxu0 0.0
      %897 = vmatpush1.msra.mxu0 0.0
      %898 = vmatprep.subr.mxu0 0.0
      %899 = vmatpush1.msra.mxu0 0.0
      %900 = vmatprep.subr.mxu0 0.0
      %901 = vmatpush1.msra.mxu0 0.0
      %902 = vmatprep.subr.mxu0 0.0
      %903 = vmatpush1.msra.mxu0 0.0
      %904 = vmatprep.subr.mxu0 0.0
      %905 = vmatpush1.msra.mxu0 0.0
      %906 = vmatprep.subr.mxu0 0.0
      %907 = vmatpush1.msra.mxu0 0.0
      %908 = vmatprep.subr.mxu0 0.0
      %909 = vmatpush1.msra.mxu0 0.0
      %910 = vmatprep.subr.mxu0 0.0
      %911 = vmatpush1.msra.mxu0 0.0
      %912 = vmatprep.subr.mxu0 0.0
      %913 = vmatpush1.msra.mxu0 0.0
      %914 = vmatprep.subr.mxu0 0.0
      %915 = vmatpush1.msra.mxu0 0.0
      %916 = vmatprep.subr.mxu0 0.0
      %917 = vmatpush1.msra.mxu0 0.0
      %918 = vmatprep.subr.mxu0 0.0
      %919 = vmatpush1.msra.mxu0 0.0
      %920 = vmatprep.subr.mxu0 0.0
      %921 = vmatpush1.msra.mxu0 0.0
      %922 = vmatprep.subr.mxu0 0.0
      %923 = vmatpush1.msra.mxu0 0.0
      %924 = vmatprep.mubr.f32.mxu0 0.0
      %925 = vmatmul.mubr.f32.gmra.mrb[0].mxu0 %v837
      %v926 = vpop.f32.mrb[0].mxu0
      %v927 = vadd.f32 0.0, %v926
      %v928 = vpop.f32.mrb[0].mxu0
      %929 = vmatprep.mubr.f32.mxu0 0.0
      %930 = vmatmul.mubr.f32.gmra.mrb[0].mxu0 %v840
      %v931 = vpop.f32.mrb[0].mxu0
      %v932 = vadd.f32 0.0, %v931
      %v933 = vpop.f32.mrb[0].mxu0
      %934 = vmatprep.mubr.f32.mxu0 0.0
      %935 = vmatmul.mubr.f32.gmra.mrb[0].mxu0 %v843
      %v936 = vpop.f32.mrb[0].mxu0
      %v937 = vadd.f32 0.0, %v936
      %v938 = vpop.f32.mrb[0].mxu0
      %939 = vmatprep.mubr.f32.mxu0 0.0
      %940 = vmatmul.mubr.f32.gmra.mrb[0].mxu0 %v846
      %v941 = vpop.f32.mrb[0].mxu0
      %v942 = vadd.f32 0.0, %v941
      %v943 = vpop.f32.mrb[0].mxu0
      %944 = vmatprep.mubr.f32.mxu0 0.0
      %945 = vmatmul.mubr.f32.gmra.mrb[0].mxu0 %v849
      %v946 = vpop.f32.mrb[0].mxu0
      %v947 = vadd.f32 0.0, %v946
      %v948 = vpop.f32.mrb[0].mxu0
      %949 = vmatprep.mubr.f32.mxu0 0.0
      %950 = vmatmul.mubr.f32.gmra.mrb[0].mxu0 %v852
      %v951 = vpop.f32.mrb[0].mxu0
      %v952 = vadd.f32 0.0, %v951
      %v953 = vpop.f32.mrb[0].mxu0
      %954 = vmatprep.mubr.f32.mxu0 0.0
      %955 = vmatmul.mubr.f32.gmra.mrb[0].mxu0 %v855
      %v956 = vpop.f32.mrb[0].mxu0
      %v957 = vadd.f32 0.0, %v956
      %v958 = vpop.f32.mrb[0].mxu0
      %959 = vmatprep.mubr.f32.mxu0 0.0
      %960 = vmatmul.mubr.f32.gmra.mrb[0].mxu0 %v858
      %v961 = vpop.f32.mrb[0].mxu0
      %v962 = vadd.f32 0.0, %v961
      %v963 = vpop.f32.mrb[0].mxu0
      %964 = vdwg.mxu0
      %v965 = vld [vmem:[%s6] sm:$0xf]
      %vm966 = vcmask 31744
      %v968 = vsel %vm966, %v927, 0
      %v971 = vsel %vm966, %v932, 0
      %v974 = vsel %vm966, %v937, 0
      %v977 = vsel %vm966, %v942, 0
      %v980 = vsel %vm966, %v947, 0
      %v983 = vsel %vm966, %v952, 0
      %v986 = vsel %vm966, %v957, 0
      %v989 = vsel %vm966, %v962, 0
      %vm991 = vcmask 1043456
      %v993 = vsel %vm991, %v965, 0
      %995 = vmatprep.subr.mxu0 0.0
      %996 = vmatpush1.msra.mxu0 %v993
      %997 = vmatprep.subr.mxu0 0.0
      %998 = vmatpush1.msra.mxu0 0.0
      %999 = vmatprep.subr.mxu0 0.0
      %1000 = vmatpush1.msra.mxu0 0.0
      %1001 = vmatprep.subr.mxu0 0.0
      %1002 = vmatpush1.msra.mxu0 0.0
      %1003 = vmatprep.subr.mxu0 0.0
      %1004 = vmatpush1.msra.mxu0 0.0
      %1005 = vmatprep.subr.mxu0 0.0
      %1006 = vmatpush1.msra.mxu0 0.0
      %1007 = vmatprep.subr.mxu0 0.0
      %1008 = vmatpush1.msra.mxu0 0.0
      %1009 = vmatprep.subr.mxu0 0.0
      %1010 = vmatpush1.msra.mxu0 0.0
      %1011 = vmatprep.subr.mxu0 0.0
      %1012 = vmatpush1.msra.mxu0 0.0
      %1013 = vmatprep.subr.mxu0 0.0
      %1014 = vmatpush1.msra.mxu0 0.0
      %1015 = vmatprep.subr.mxu0 0.0
      %1016 = vmatpush1.msra.mxu0 0.0
      %1017 = vmatprep.subr.mxu0 0.0
      %1018 = vmatpush1.msra.mxu0 0.0
      %1019 = vmatprep.subr.mxu0 0.0
      %1020 = vmatpush1.msra.mxu0 0.0
      %1021 = vmatprep.subr.mxu0 0.0
      %1022 = vmatpush1.msra.mxu0 0.0
      %1023 = vmatprep.subr.mxu0 0.0
      %1024 = vmatpush1.msra.mxu0 0.0
      %1025 = vmatprep.subr.mxu0 0.0
      %1026 = vmatpush1.msra.mxu0 0.0
      %1027 = vmatprep.subr.mxu0 0.0
      %1028 = vmatpush1.msra.mxu0 0.0
      %1029 = vmatprep.subr.mxu0 0.0
      %1030 = vmatpush1.msra.mxu0 0.0
      %1031 = vmatprep.subr.mxu0 0.0
      %1032 = vmatpush1.msra.mxu0 0.0
      %1033 = vmatprep.subr.mxu0 0.0
      %1034 = vmatpush1.msra.mxu0 0.0
      %1035 = vmatprep.subr.mxu0 0.0
      %1036 = vmatpush1.msra.mxu0 0.0
      %1037 = vmatprep.subr.mxu0 0.0
      %1038 = vmatpush1.msra.mxu0 0.0
      %1039 = vmatprep.subr.mxu0 0.0
      %1040 = vmatpush1.msra.mxu0 0.0
      %1041 = vmatprep.subr.mxu0 0.0
      %1042 = vmatpush1.msra.mxu0 0.0
      %1043 = vmatprep.subr.mxu0 0.0
      %1044 = vmatpush1.msra.mxu0 0.0
      %1045 = vmatprep.subr.mxu0 0.0
      %1046 = vmatpush1.msra.mxu0 0.0
      %1047 = vmatprep.subr.mxu0 0.0
      %1048 = vmatpush1.msra.mxu0 0.0
      %1049 = vmatprep.subr.mxu0 0.0
      %1050 = vmatpush1.msra.mxu0 0.0
      %1051 = vmatprep.subr.mxu0 0.0
      %1052 = vmatpush1.msra.mxu0 0.0
      %1053 = vmatprep.subr.mxu0 0.0
      %1054 = vmatpush1.msra.mxu0 0.0
      %1055 = vmatprep.subr.mxu0 0.0
      %1056 = vmatpush1.msra.mxu0 0.0
      %1057 = vmatprep.subr.mxu0 0.0
      %1058 = vmatpush1.msra.mxu0 0.0
      %1059 = vmatprep.mubr.f32.mxu0 0.0
      %1060 = vmatmul.mubr.f32.gmra.mrb[0].mxu0 %v968
      %v1061 = vpop.f32.mrb[0].mxu0
      %v1062 = vadd.f32 6.4e-05, %v1061
      %v1063 = vpop.f32.mrb[0].mxu0
      %1064 = vmatprep.mubr.f32.mxu0 0.0
      %1065 = vmatmul.mubr.f32.gmra.mrb[0].mxu0 %v971
      %v1066 = vpop.f32.mrb[0].mxu0
      %v1067 = vadd.f32 6.4e-05, %v1066
      %v1068 = vpop.f32.mrb[0].mxu0
      %1069 = vmatprep.mubr.f32.mxu0 0.0
      %1070 = vmatmul.mubr.f32.gmra.mrb[0].mxu0 %v974
      %v1071 = vpop.f32.mrb[0].mxu0
      %v1072 = vadd.f32 6.4e-05, %v1071
      %v1073 = vpop.f32.mrb[0].mxu0
      %1074 = vmatprep.mubr.f32.mxu0 0.0
      %1075 = vmatmul.mubr.f32.gmra.mrb[0].mxu0 %v977
      %v1076 = vpop.f32.mrb[0].mxu0
      %v1077 = vadd.f32 6.4e-05, %v1076
      %v1078 = vpop.f32.mrb[0].mxu0
      %1079 = vmatprep.mubr.f32.mxu0 0.0
      %1080 = vmatmul.mubr.f32.gmra.mrb[0].mxu0 %v980
      %v1081 = vpop.f32.mrb[0].mxu0
      %v1082 = vadd.f32 6.4e-05, %v1081
      %v1083 = vpop.f32.mrb[0].mxu0
      %1084 = vmatprep.mubr.f32.mxu0 0.0
      %1085 = vmatmul.mubr.f32.gmra.mrb[0].mxu0 %v983
      %v1086 = vpop.f32.mrb[0].mxu0
      %v1087 = vadd.f32 6.4e-05, %v1086
      %v1088 = vpop.f32.mrb[0].mxu0
      %1089 = vmatprep.mubr.f32.mxu0 0.0
      %1090 = vmatmul.mubr.f32.gmra.mrb[0].mxu0 %v986
      %v1091 = vpop.f32.mrb[0].mxu0
      %v1092 = vadd.f32 6.4e-05, %v1091
      %v1093 = vpop.f32.mrb[0].mxu0
      %1094 = vmatprep.mubr.f32.mxu0 0.0
      %1095 = vmatmul.mubr.f32.gmra.mrb[0].mxu0 %v989
      %v1096 = vpop.f32.mrb[0].mxu0
      %v1097 = vadd.f32 6.4e-05, %v1096
      %v1098 = vpop.f32.mrb[0].mxu0
      %1099 = vdwg.mxu0
      %v1100 = vrcp.pop %v1062
      %v1101 = vrcp.pop %v1067
      %v1102 = vrcp.pop %v1072
      %v1103 = vrcp.pop %v1077
      %v1104 = vrcp.pop %v1082
      %v1105 = vrcp.pop %v1087
      %v1106 = vrcp.pop %v1092
      %v1107 = vrcp.pop %v1097
      %v1108 = vld [vmem:[%s4] sm:$0xff]
      %v1109 = vld [vmem:[%s4 + $0x8] sm:$0xff]
      %1114 = vrot.lane.b32.xlu0 %v716, 96
      %v1115 = vpop.permute.xlu0 %1114
      %1116 = vrot.lane.b32.xlu0 %v717, 96
      %v1117 = vpop.permute.xlu0 %1116
      %1118 = vrot.lane.b32.xlu0 %v718, 96
      %v1119 = vpop.permute.xlu0 %1118
      %1120 = vrot.lane.b32.xlu0 %v719, 96
      %v1121 = vpop.permute.xlu0 %1120
      %1126 = vxpose.xlu0.c.b16.start [1/8] %v1115, 128
      %1127 = vxpose.xlu0.c.b16.cont [2/8] %v1117, 128
      %1128 = vxpose.xlu0.c.b16.cont [3/8] %v1119, 128
      %1129 = vxpose.xlu0.c.b16.cont [4/8] %v1121, 128
      %1130 = vxpose.xlu0.c.b16.cont [5/8] 0, 128
      %1131 = vxpose.xlu0.c.b16.cont [6/8] 0, 128
      %1132 = vxpose.xlu0.c.b16.cont [7/8] 0, 128
      %1133 = vxpose.xlu0.c.b16.end [8/8] 0, 128
      %v1134 = vpop.trf.xlu0
      %v1135 = vpop.trf.xlu0
      %v1136 = vpop.trf.xlu0
      %v1137 = vpop.trf.xlu0
      %v1138 = vpop.trf.xlu0
      %v1139 = vpop.trf.xlu0
      %v1140 = vpop.trf.xlu0
      %v1141 = vpop.trf.xlu0
      %vm1142 = vcmask 523264
      %v1144 = vsel %vm1142, %v1134, 0
      %1146 = vmatprep.subr.bf16.mxu0 0
      %1147 = vmatpush1.bf16.msra.mxu0 %v315
      %1148 = vmatprep.subr.bf16.mxu0 0
      %1149 = vmatpush1.bf16.msra.mxu0 %v316
      %1150 = vmatprep.subr.bf16.mxu0 0
      %1151 = vmatpush1.bf16.msra.mxu0 %v317
      %1152 = vmatprep.subr.bf16.mxu0 0
      %1153 = vmatpush1.bf16.msra.mxu0 %v318
      %1154 = vmatprep.subr.bf16.mxu0 0
      %1155 = vmatpush1.bf16.msra.mxu0 0
      %1156 = vmatprep.subr.bf16.mxu0 0
      %1157 = vmatpush1.bf16.msra.mxu0 0
      %1158 = vmatprep.subr.bf16.mxu0 0
      %1159 = vmatpush1.bf16.msra.mxu0 0
      %1160 = vmatprep.subr.bf16.mxu0 0
      %1161 = vmatpush1.bf16.msra.mxu0 0
      %1162 = vmatprep.subr.bf16.mxu0 0
      %1163 = vmatpush1.bf16.msra.mxu0 0
      %1164 = vmatprep.subr.bf16.mxu0 0
      %1165 = vmatpush1.bf16.msra.mxu0 0
      %1166 = vmatprep.subr.bf16.mxu0 0
      %1167 = vmatpush1.bf16.msra.mxu0 0
      %1168 = vmatprep.subr.bf16.mxu0 0
      %1169 = vmatpush1.bf16.msra.mxu0 0
      %1170 = vmatprep.subr.bf16.mxu0 0
      %1171 = vmatpush1.bf16.msra.mxu0 0
      %1172 = vmatprep.subr.bf16.mxu0 0
      %1173 = vmatpush1.bf16.msra.mxu0 0
      %1174 = vmatprep.subr.bf16.mxu0 0
      %1175 = vmatpush1.bf16.msra.mxu0 0
      %1176 = vmatprep.subr.bf16.mxu0 0
      %1177 = vmatpush1.bf16.msra.mxu0 0
      %1178 = vmatprep.mubr.bf16.mxu0 0
      %1179 = vmatmul.mubr.bf16.gmra.mrb[0].mxu0 %v1144
      %v1180 = vpop.f32.mrb[0].mxu0
      %v1181 = vadd.f32 0.0, %v1180
      %v1182 = vpop.f32.mrb[0].mxu0
      %v1183 = vpop.f32.mrb[0].mxu0
      %v1184 = vadd.f32 0.0, %v1183
      %v1185 = vpop.f32.mrb[0].mxu0
      %1186 = vdwg.mxu0
      %1191 = vrot.lane.b32.xlu0 %v792, 80
      %v1192 = vpop.permute.xlu0 %1191
      %1193 = vrot.lane.b32.xlu0 %v793, 80
      %v1194 = vpop.permute.xlu0 %1193
      %1195 = vrot.lane.b32.xlu0 %v794, 80
      %v1196 = vpop.permute.xlu0 %1195
      %1197 = vrot.lane.b32.xlu0 %v795, 80
      %v1198 = vpop.permute.xlu0 %1197
      %1203 = vxpose.xlu0.c.b16.start [1/8] %v1192, 128
      %1204 = vxpose.xlu0.c.b16.cont [2/8] %v1194, 128
      %1205 = vxpose.xlu0.c.b16.cont [3/8] %v1196, 128
      %1206 = vxpose.xlu0.c.b16.cont [4/8] %v1198, 128
      %1207 = vxpose.xlu0.c.b16.cont [5/8] 0, 128
      %1208 = vxpose.xlu0.c.b16.cont [6/8] 0, 128
      %1209 = vxpose.xlu0.c.b16.cont [7/8] 0, 128
      %1210 = vxpose.xlu0.c.b16.end [8/8] 0, 128
      %v1211 = vpop.trf.xlu0
      %v1212 = vpop.trf.xlu0
      %v1213 = vpop.trf.xlu0
      %v1214 = vpop.trf.xlu0
      %v1215 = vpop.trf.xlu0
      %v1216 = vpop.trf.xlu0
      %v1217 = vpop.trf.xlu0
      %v1218 = vpop.trf.xlu0
      %v1220 = vsel %vm1142, %v1211, 0
      %1222 = vmatprep.subr.bf16.mxu0 0
      %1223 = vmatpush1.bf16.msra.mxu0 %v315
      %1224 = vmatprep.subr.bf16.mxu0 0
      %1225 = vmatpush1.bf16.msra.mxu0 %v316
      %1226 = vmatprep.subr.bf16.mxu0 0
      %1227 = vmatpush1.bf16.msra.mxu0 %v317
      %1228 = vmatprep.subr.bf16.mxu0 0
      %1229 = vmatpush1.bf16.msra.mxu0 %v318
      %1230 = vmatprep.subr.bf16.mxu0 0
      %1231 = vmatpush1.bf16.msra.mxu0 0
      %1232 = vmatprep.subr.bf16.mxu0 0
      %1233 = vmatpush1.bf16.msra.mxu0 0
      %1234 = vmatprep.subr.bf16.mxu0 0
      %1235 = vmatpush1.bf16.msra.mxu0 0
      %1236 = vmatprep.subr.bf16.mxu0 0
      %1237 = vmatpush1.bf16.msra.mxu0 0
      %1238 = vmatprep.subr.bf16.mxu0 0
      %1239 = vmatpush1.bf16.msra.mxu0 0
      %1240 = vmatprep.subr.bf16.mxu0 0
      %1241 = vmatpush1.bf16.msra.mxu0 0
      %1242 = vmatprep.subr.bf16.mxu0 0
      %1243 = vmatpush1.bf16.msra.mxu0 0
      %1244 = vmatprep.subr.bf16.mxu0 0
      %1245 = vmatpush1.bf16.msra.mxu0 0
      %1246 = vmatprep.subr.bf16.mxu0 0
      %1247 = vmatpush1.bf16.msra.mxu0 0
      %1248 = vmatprep.subr.bf16.mxu0 0
      %1249 = vmatpush1.bf16.msra.mxu0 0
      %1250 = vmatprep.subr.bf16.mxu0 0
      %1251 = vmatpush1.bf16.msra.mxu0 0
      %1252 = vmatprep.subr.bf16.mxu0 0
      %1253 = vmatpush1.bf16.msra.mxu0 0
      %1254 = vmatprep.mubr.bf16.mxu0 0
      %1255 = vmatmul.mubr.bf16.gmra.mrb[0].mxu0 %v1220
      %v1256 = vpop.f32.mrb[0].mxu0
      %v1257 = vadd.f32 0.0, %v1256
      %v1258 = vpop.f32.mrb[0].mxu0
      %v1259 = vpop.f32.mrb[0].mxu0
      %v1260 = vadd.f32 0.0, %v1259
      %v1261 = vpop.f32.mrb[0].mxu0
      %1262 = vdwg.mxu0
      %v1263 = vmul.f32 %v1181, %v1108
      %v1264 = vmul.f32 %v1184, %v1109
      %v1265 = vpack.c.bf16 %v1264, %v1263
      %v1266 = vmul.f32 %v1257, %v1108
      %v1267 = vmul.f32 %v1260, %v1109
      %v1268 = vpack.c.bf16 %v1267, %v1266
      %1273 = vrot.lane.b32.xlu0 %v640, 112
      %v1274 = vpop.permute.xlu0 %1273
      %1275 = vrot.lane.b32.xlu0 %v641, 112
      %v1276 = vpop.permute.xlu0 %1275
      %1277 = vrot.lane.b32.xlu0 %v642, 112
      %v1278 = vpop.permute.xlu0 %1277
      %1279 = vrot.lane.b32.xlu0 %v643, 112
      %v1280 = vpop.permute.xlu0 %1279
      %vm1281 = vcmask 130048
      %v1283 = vsel %vm1281, %v1274, 0
      %v1286 = vsel %vm1281, %v1276, 0
      %v1289 = vsel %vm1281, %v1278, 0
      %v1292 = vsel %vm1281, %v1280, 0
      %1294 = vmatprep.subr.bf16.mxu0 0
      %1295 = vmatpush1.bf16.msra.mxu0 %v1268
      %1296 = vmatprep.subr.bf16.mxu0 0
      %1297 = vmatpush1.bf16.msra.mxu0 0
      %1298 = vmatprep.subr.bf16.mxu0 0
      %1299 = vmatpush1.bf16.msra.mxu0 0
      %1300 = vmatprep.subr.bf16.mxu0 0
      %1301 = vmatpush1.bf16.msra.mxu0 0
      %1302 = vmatprep.subr.bf16.mxu0 0
      %1303 = vmatpush1.bf16.msra.mxu0 0
      %1304 = vmatprep.subr.bf16.mxu0 0
      %1305 = vmatpush1.bf16.msra.mxu0 0
      %1306 = vmatprep.subr.bf16.mxu0 0
      %1307 = vmatpush1.bf16.msra.mxu0 0
      %1308 = vmatprep.subr.bf16.mxu0 0
      %1309 = vmatpush1.bf16.msra.mxu0 0
      %1310 = vmatprep.subr.bf16.mxu0 0
      %1311 = vmatpush1.bf16.msra.mxu0 0
      %1312 = vmatprep.subr.bf16.mxu0 0
      %1313 = vmatpush1.bf16.msra.mxu0 0
      %1314 = vmatprep.subr.bf16.mxu0 0
      %1315 = vmatpush1.bf16.msra.mxu0 0
      %1316 = vmatprep.subr.bf16.mxu0 0
      %1317 = vmatpush1.bf16.msra.mxu0 0
      %1318 = vmatprep.subr.bf16.mxu0 0
      %1319 = vmatpush1.bf16.msra.mxu0 0
      %1320 = vmatprep.subr.bf16.mxu0 0
      %1321 = vmatpush1.bf16.msra.mxu0 0
      %1322 = vmatprep.subr.bf16.mxu0 0
      %1323 = vmatpush1.bf16.msra.mxu0 0
      %1324 = vmatprep.subr.bf16.mxu0 0
      %1325 = vmatpush1.bf16.msra.mxu0 0
      %1326 = vmatprep.mubr.bf16.mxu0 0
      %1327 = vmatmul.mubr.bf16.gmra.mrb[0].mxu0 %v1283
      %v1328 = vpop.f32.mrb[0].mxu0
      %v1329 = vadd.f32 0.0, %v1328
      %v1330 = vpop.f32.mrb[0].mxu0
      %v1331 = vpop.f32.mrb[0].mxu0
      %v1332 = vadd.f32 0.0, %v1331
      %v1333 = vpop.f32.mrb[0].mxu0
      %1334 = vmatprep.mubr.bf16.mxu0 0
      %1335 = vmatmul.mubr.bf16.gmra.mrb[0].mxu0 %v1286
      %v1336 = vpop.f32.mrb[0].mxu0
      %v1337 = vadd.f32 0.0, %v1336
      %v1338 = vpop.f32.mrb[0].mxu0
      %v1339 = vpop.f32.mrb[0].mxu0
      %v1340 = vadd.f32 0.0, %v1339
      %v1341 = vpop.f32.mrb[0].mxu0
      %1342 = vmatprep.mubr.bf16.mxu0 0
      %1343 = vmatmul.mubr.bf16.gmra.mrb[0].mxu0 %v1289
      %v1344 = vpop.f32.mrb[0].mxu0
      %v1345 = vadd.f32 0.0, %v1344
      %v1346 = vpop.f32.mrb[0].mxu0
      %v1347 = vpop.f32.mrb[0].mxu0
      %v1348 = vadd.f32 0.0, %v1347
      %v1349 = vpop.f32.mrb[0].mxu0
      %1350 = vmatprep.mubr.bf16.mxu0 0
      %1351 = vmatmul.mubr.bf16.gmra.mrb[0].mxu0 %v1292
      %v1352 = vpop.f32.mrb[0].mxu0
      %v1353 = vadd.f32 0.0, %v1352
      %v1354 = vpop.f32.mrb[0].mxu0
      %v1355 = vpop.f32.mrb[0].mxu0
      %v1356 = vadd.f32 0.0, %v1355
      %v1357 = vpop.f32.mrb[0].mxu0
      %1358 = vdwg.mxu0
      %v1360 = vsel %vm1281, %v524, 0
      %v1363 = vsel %vm1281, %v525, 0
      %v1366 = vsel %vm1281, %v526, 0
      %v1369 = vsel %vm1281, %v527, 0
      %1371 = vmatprep.subr.bf16.mxu0 0
      %1372 = vmatpush1.bf16.msra.mxu0 %v1265
      %1373 = vmatprep.subr.bf16.mxu0 0
      %1374 = vmatpush1.bf16.msra.mxu0 0
      %1375 = vmatprep.subr.bf16.mxu0 0
      %1376 = vmatpush1.bf16.msra.mxu0 0
      %1377 = vmatprep.subr.bf16.mxu0 0
      %1378 = vmatpush1.bf16.msra.mxu0 0
      %1379 = vmatprep.subr.bf16.mxu0 0
      %1380 = vmatpush1.bf16.msra.mxu0 0
      %1381 = vmatprep.subr.bf16.mxu0 0
      %1382 = vmatpush1.bf16.msra.mxu0 0
      %1383 = vmatprep.subr.bf16.mxu0 0
      %1384 = vmatpush1.bf16.msra.mxu0 0
      %1385 = vmatprep.subr.bf16.mxu0 0
      %1386 = vmatpush1.bf16.msra.mxu0 0
      %1387 = vmatprep.subr.bf16.mxu0 0
      %1388 = vmatpush1.bf16.msra.mxu0 0
      %1389 = vmatprep.subr.bf16.mxu0 0
      %1390 = vmatpush1.bf16.msra.mxu0 0
      %1391 = vmatprep.subr.bf16.mxu0 0
      %1392 = vmatpush1.bf16.msra.mxu0 0
      %1393 = vmatprep.subr.bf16.mxu0 0
      %1394 = vmatpush1.bf16.msra.mxu0 0
      %1395 = vmatprep.subr.bf16.mxu0 0
      %1396 = vmatpush1.bf16.msra.mxu0 0
      %1397 = vmatprep.subr.bf16.mxu0 0
      %1398 = vmatpush1.bf16.msra.mxu0 0
      %1399 = vmatprep.subr.bf16.mxu0 0
      %1400 = vmatpush1.bf16.msra.mxu0 0
      %1401 = vmatprep.subr.bf16.mxu0 0
      %1402 = vmatpush1.bf16.msra.mxu0 0
      %1403 = vmatprep.mubr.bf16.mxu0 0
      %1404 = vmatmul.mubr.bf16.gmra.mrb[0].mxu0 %v1360
      %v1405 = vpop.f32.mrb[0].mxu0
      %v1406 = vadd.f32 %v1329, %v1405
      %v1407 = vpop.f32.mrb[0].mxu0
      %v1408 = vpop.f32.mrb[0].mxu0
      %v1409 = vadd.f32 %v1332, %v1408
      %v1410 = vpop.f32.mrb[0].mxu0
      %1411 = vmatprep.mubr.bf16.mxu0 0
      %1412 = vmatmul.mubr.bf16.gmra.mrb[0].mxu0 %v1363
      %v1413 = vpop.f32.mrb[0].mxu0
      %v1414 = vadd.f32 %v1337, %v1413
      %v1415 = vpop.f32.mrb[0].mxu0
      %v1416 = vpop.f32.mrb[0].mxu0
      %v1417 = vadd.f32 %v1340, %v1416
      %v1418 = vpop.f32.mrb[0].mxu0
      %1419 = vmatprep.mubr.bf16.mxu0 0
      %1420 = vmatmul.mubr.bf16.gmra.mrb[0].mxu0 %v1366
      %v1421 = vpop.f32.mrb[0].mxu0
      %v1422 = vadd.f32 %v1345, %v1421
      %v1423 = vpop.f32.mrb[0].mxu0
      %v1424 = vpop.f32.mrb[0].mxu0
      %v1425 = vadd.f32 %v1348, %v1424
      %v1426 = vpop.f32.mrb[0].mxu0
      %1427 = vmatprep.mubr.bf16.mxu0 0
      %1428 = vmatmul.mubr.bf16.gmra.mrb[0].mxu0 %v1369
      %v1429 = vpop.f32.mrb[0].mxu0
      %v1430 = vadd.f32 %v1353, %v1429
      %v1431 = vpop.f32.mrb[0].mxu0
      %v1432 = vpop.f32.mrb[0].mxu0
      %v1433 = vadd.f32 %v1356, %v1432
      %v1434 = vpop.f32.mrb[0].mxu0
      %1435 = vdwg.mxu0
      %v1436 = vmul.f32 %v1406, %v1100
      %v1437 = vmul.f32 %v1409, %v1101
      %v1438 = vmul.f32 %v1414, %v1102
      %v1439 = vmul.f32 %v1417, %v1103
      %v1440 = vmul.f32 %v1422, %v1104
      %v1441 = vmul.f32 %v1425, %v1105
      %v1442 = vmul.f32 %v1430, %v1106
      %v1443 = vmul.f32 %v1433, %v1107
      %v1444 = vld [vmem:[%s7] sm:$0xff]
      %v1445 = vld [vmem:[%s7 + $0x8] sm:$0x3]
      %v1446 = vlaneseq
      %v1447 = vshrl.u32 %v1446, 7
      %v1448 = vsub.s32 1, %v1447
      %v1449 = vrot.slane %v1445, %v1448
      %v1450 = vadd.f32 %v1436, %v1449
      %v1451 = vadd.f32 %v1437, %v1449
      %v1452 = vadd.f32 %v1438, %v1449
      %v1453 = vadd.f32 %v1439, %v1449
      %v1454 = vadd.f32 %v1440, %v1449
      %v1455 = vadd.f32 %v1441, %v1449
      %v1456 = vadd.f32 %v1442, %v1449
      %v1457 = vadd.f32 %v1443, %v1449
      %v1458 = vlaneseq
      %v1459 = vshrl.u32 %v1458, 7
      %v1460 = vadd.s32 %v1459, 8
      %v1461 = vadd.s32 %v1459, 16
      %v1462 = vadd.s32 %v1459, 24
      %v1463 = vadd.s32 %v1459, 32
      %v1464 = vadd.s32 %v1459, 40
      %v1465 = vadd.s32 %v1459, 48
      %v1466 = vadd.s32 %v1459, 56
      %vm1467 = vcmp.lt.s32.totalorder %v1459, 0
      %v1468 = vsub.s32 0, %v1459
      %v1469 = vsel %vm1467, %v1468, %v1459
      %v1470 = vshrl.u32 %v1469, 3
      %v1471 = vand.u32 %v1469, 7
      %v1472 = vsub.s32 0, %v1471
      %v1473 = vsel %vm1467, %v1472, %v1471
      %vm1474 = vcmp.lt.s32.totalorder %v1460, 0
      %v1475 = vsub.s32 0, %v1460
      %v1476 = vsel %vm1474, %v1475, %v1460
      %v1477 = vshrl.u32 %v1476, 3
      %v1478 = vand.u32 %v1476, 7
      %v1479 = vsub.s32 0, %v1478
      %v1480 = vsel %vm1474, %v1479, %v1478
      %vm1481 = vcmp.lt.s32.totalorder %v1461, 0
      %v1482 = vsub.s32 0, %v1461
      %v1483 = vsel %vm1481, %v1482, %v1461
      %v1484 = vshrl.u32 %v1483, 3
      %v1485 = vand.u32 %v1483, 7
      %v1486 = vsub.s32 0, %v1485
      %v1487 = vsel %vm1481, %v1486, %v1485
      %vm1488 = vcmp.lt.s32.totalorder %v1462, 0
      %v1489 = vsub.s32 0, %v1462
      %v1490 = vsel %vm1488, %v1489, %v1462
      %v1491 = vshrl.u32 %v1490, 3
      %v1492 = vand.u32 %v1490, 7
      %v1493 = vsub.s32 0, %v1492
      %v1494 = vsel %vm1488, %v1493, %v1492
      %vm1495 = vcmp.lt.s32.totalorder %v1463, 0
      %v1496 = vsub.s32 0, %v1463
      %v1497 = vsel %vm1495, %v1496, %v1463
      %v1498 = vshrl.u32 %v1497, 3
      %v1499 = vand.u32 %v1497, 7
      %v1500 = vsub.s32 0, %v1499
      %v1501 = vsel %vm1495, %v1500, %v1499
      %vm1502 = vcmp.lt.s32.totalorder %v1464, 0
      %v1503 = vsub.s32 0, %v1464
      %v1504 = vsel %vm1502, %v1503, %v1464
      %v1505 = vshrl.u32 %v1504, 3
      %v1506 = vand.u32 %v1504, 7
      %v1507 = vsub.s32 0, %v1506
      %v1508 = vsel %vm1502, %v1507, %v1506
      %vm1509 = vcmp.lt.s32.totalorder %v1465, 0
      %v1510 = vsub.s32 0, %v1465
      %v1511 = vsel %vm1509, %v1510, %v1465
      %v1512 = vshrl.u32 %v1511, 3
      %v1513 = vand.u32 %v1511, 7
      %v1514 = vsub.s32 0, %v1513
      %v1515 = vsel %vm1509, %v1514, %v1513
      %vm1516 = vcmp.lt.s32.totalorder %v1466, 0
      %v1517 = vsub.s32 0, %v1466
      %v1518 = vsel %vm1516, %v1517, %v1466
      %v1519 = vshrl.u32 %v1518, 3
      %v1520 = vand.u32 %v1518, 7
      %v1521 = vsub.s32 0, %v1520
      %v1522 = vsel %vm1516, %v1521, %v1520
      %vm1523 = vcmp.ne.s32.totalorder %v1473, 0
      %vm1524 = vcmp.ne.s32.totalorder %v1480, 0
      %vm1525 = vcmp.ne.s32.totalorder %v1487, 0
      %vm1526 = vcmp.ne.s32.totalorder %v1494, 0
      %vm1527 = vcmp.ne.s32.totalorder %v1501, 0
      %vm1528 = vcmp.ne.s32.totalorder %v1508, 0
      %vm1529 = vcmp.ne.s32.totalorder %v1515, 0
      %vm1530 = vcmp.ne.s32.totalorder %v1522, 0
      %vm1531 = vcmp.lt.s32.totalorder %v1473, 0
      %vm1532 = vcmp.lt.s32.totalorder %v1480, 0
      %vm1533 = vcmp.lt.s32.totalorder %v1487, 0
      %vm1534 = vcmp.lt.s32.totalorder %v1494, 0
      %vm1535 = vcmp.lt.s32.totalorder %v1501, 0
      %vm1536 = vcmp.lt.s32.totalorder %v1508, 0
      %vm1537 = vcmp.lt.s32.totalorder %v1515, 0
      %vm1538 = vcmp.lt.s32.totalorder %v1522, 0
      %vm1539 = vmand %vm1531, %vm1523
      %vm1540 = vmand %vm1532, %vm1524
      %vm1541 = vmand %vm1533, %vm1525
      %vm1542 = vmand %vm1534, %vm1526
      %vm1543 = vmand %vm1535, %vm1527
      %vm1544 = vmand %vm1536, %vm1528
      %vm1545 = vmand %vm1537, %vm1529
      %vm1546 = vmand %vm1538, %vm1530
      %v1547 = vadd.s32 %v1473, 8
      %v1548 = vadd.s32 %v1480, 8
      %v1549 = vadd.s32 %v1487, 8
      %v1550 = vadd.s32 %v1494, 8
      %v1551 = vadd.s32 %v1501, 8
      %v1552 = vadd.s32 %v1508, 8
      %v1553 = vadd.s32 %v1515, 8
      %v1554 = vadd.s32 %v1522, 8
      %v1555 = vsel %vm1539, %v1547, %v1473
      %v1556 = vsel %vm1540, %v1548, %v1480
      %v1557 = vsel %vm1541, %v1549, %v1487
      %v1558 = vsel %vm1542, %v1550, %v1494
      %v1559 = vsel %vm1543, %v1551, %v1501
      %v1560 = vsel %vm1544, %v1552, %v1508
      %v1561 = vsel %vm1545, %v1553, %v1515
      %v1562 = vsel %vm1546, %v1554, %v1522
      %vm1570 = vcmask 1040384
      %v1571 = vrot.slane %v307, 7
      %v1572 = vrot.slane %v308, 7
      %v1573 = vsel %vm1570, %v1571, %v1572
      %v1574 = vrot.slane %v309, 7
      %v1575 = vsel %vm1570, %v1572, %v1574
      %v1576 = vrot.slane %v310, 7
      %v1577 = vsel %vm1570, %v1574, %v1576
      %v1578 = vrot.slane %v311, 7
      %v1579 = vsel %vm1570, %v1576, %v1578
      %v1580 = vrot.slane %v312, 7
      %v1581 = vsel %vm1570, %v1578, %v1580
      %v1582 = vrot.slane %v313, 7
      %v1583 = vsel %vm1570, %v1580, %v1582
      %v1591 = vsel %vm1570, 0.0, %v1571
      %v1592 = vlaneseq
      %v1593 = vshrl.u32 %v1592, 7
      %v1594 = vsub.s32 0, %v1593
      %v1595 = vrot.slane %v1444, %v1594
      %v1596 = vmul.f32 %v1595, 0.0
      %v1597 = vmul.f32 %v1591, %v1595
      %v1598 = vmul.f32 %v1573, %v1595
      %v1599 = vmul.f32 %v1575, %v1595
      %v1600 = vmul.f32 %v1577, %v1595
      %v1601 = vmul.f32 %v1579, %v1595
      %v1602 = vmul.f32 %v1581, %v1595
      %v1603 = vmul.f32 %v1583, %v1595
      %vm1604 = vcmp.ge.s32.totalorder %v1555, 1
      %vm1605 = vcmp.ge.s32.totalorder %v1556, 1
      %vm1606 = vcmp.ge.s32.totalorder %v1557, 1
      %vm1607 = vcmp.ge.s32.totalorder %v1558, 1
      %vm1608 = vcmp.ge.s32.totalorder %v1559, 1
      %vm1609 = vcmp.ge.s32.totalorder %v1560, 1
      %vm1610 = vcmp.ge.s32.totalorder %v1561, 1
      %vm1611 = vcmp.ge.s32.totalorder %v1562, 1
      %v1612 = vsel %vm1604, 1, 0
      %v1613 = vsel %vm1605, 1, 0
      %v1614 = vsel %vm1606, 1, 0
      %v1615 = vsel %vm1607, 1, 0
      %v1616 = vsel %vm1608, 1, 0
      %v1617 = vsel %vm1609, 1, 0
      %v1618 = vsel %vm1610, 1, 0
      %v1619 = vsel %vm1611, 1, 0
      %vm1620 = vcmp.eq.s32.totalorder %v1612, 1
      %vm1621 = vcmp.eq.s32.totalorder %v1613, 1
      %vm1622 = vcmp.eq.s32.totalorder %v1614, 1
      %vm1623 = vcmp.eq.s32.totalorder %v1615, 1
      %vm1624 = vcmp.eq.s32.totalorder %v1616, 1
      %vm1625 = vcmp.eq.s32.totalorder %v1617, 1
      %vm1626 = vcmp.eq.s32.totalorder %v1618, 1
      %vm1627 = vcmp.eq.s32.totalorder %v1619, 1
      %v1628 = vsel %vm1620, %v1596, 0.0
      %v1629 = vsel %vm1621, %v1597, 0.0
      %v1630 = vsel %vm1622, %v1598, 0.0
      %v1631 = vsel %vm1623, %v1599, 0.0
      %v1632 = vsel %vm1624, %v1600, 0.0
      %v1633 = vsel %vm1625, %v1601, 0.0
      %v1634 = vsel %vm1626, %v1602, 0.0
      %v1635 = vsel %vm1627, %v1603, 0.0
      %v1636 = vadd.f32 %v1450, %v1628
      %v1637 = vadd.f32 %v1451, %v1629
      %v1638 = vadd.f32 %v1452, %v1630
      %v1639 = vadd.f32 %v1453, %v1631
      %v1640 = vadd.f32 %v1454, %v1632
      %v1641 = vadd.f32 %v1455, %v1633
      %v1642 = vadd.f32 %v1456, %v1634
      %v1643 = vadd.f32 %v1457, %v1635
      %v1644 = vlaneseq
      %v1645 = vshrl.u32 %v1644, 7
      %v1646 = vsub.s32 1, %v1645
      %v1647 = vrot.slane %v1444, %v1646
      %v1648 = vmul.f32 %v1647, 0.0
      %v1649 = vmul.f32 %v307, %v1647
      %v1650 = vmul.f32 %v308, %v1647
      %v1651 = vmul.f32 %v309, %v1647
      %v1652 = vmul.f32 %v310, %v1647
      %v1653 = vmul.f32 %v311, %v1647
      %v1654 = vmul.f32 %v312, %v1647
      %v1655 = vmul.f32 %v313, %v1647
      %v1656 = vadd.f32 %v1636, %v1648
      %v1657 = vadd.f32 %v1637, %v1649
      %v1658 = vadd.f32 %v1638, %v1650
      %v1659 = vadd.f32 %v1639, %v1651
      %v1660 = vadd.f32 %v1640, %v1652
      %v1661 = vadd.f32 %v1641, %v1653
      %v1662 = vadd.f32 %v1642, %v1654
      %v1663 = vadd.f32 %v1643, %v1655
      %vm1665 = vcmask 1046528
      %v1666 = vrot.slane %v307, 1
      %v1667 = vrot.slane %v308, 1
      %v1668 = vsel %vm1665, %v1666, %v1667
      %v1669 = vrot.slane %v309, 1
      %v1670 = vsel %vm1665, %v1667, %v1669
      %v1671 = vrot.slane %v310, 1
      %v1672 = vsel %vm1665, %v1669, %v1671
      %v1673 = vrot.slane %v311, 1
      %v1674 = vsel %vm1665, %v1671, %v1673
      %v1675 = vrot.slane %v312, 1
      %v1676 = vsel %vm1665, %v1673, %v1675
      %v1677 = vrot.slane %v313, 1
      %v1678 = vsel %vm1665, %v1675, %v1677
      %v1679 = vrot.slane %v314, 1
      %v1680 = vsel %vm1665, %v1677, %v1679
      %v1689 = vsel %vm1665, 0.0, %v1666
      %v1690 = vlaneseq
      %v1691 = vshrl.u32 %v1690, 7
      %v1692 = vsub.s32 2, %v1691
      %v1693 = vrot.slane %v1444, %v1692
      %v1694 = vmul.f32 %v1689, %v1693
      %v1695 = vmul.f32 %v1668, %v1693
      %v1696 = vmul.f32 %v1670, %v1693
      %v1697 = vmul.f32 %v1672, %v1693
      %v1698 = vmul.f32 %v1674, %v1693
      %v1699 = vmul.f32 %v1676, %v1693
      %v1700 = vmul.f32 %v1678, %v1693
      %v1701 = vmul.f32 %v1680, %v1693
      %vm1702 = vcmp.lt.s32.totalorder %v1555, 7
      %vm1703 = vcmp.lt.s32.totalorder %v1556, 7
      %vm1704 = vcmp.lt.s32.totalorder %v1557, 7
      %vm1705 = vcmp.lt.s32.totalorder %v1558, 7
      %vm1706 = vcmp.lt.s32.totalorder %v1559, 7
      %vm1707 = vcmp.lt.s32.totalorder %v1560, 7
      %vm1708 = vcmp.lt.s32.totalorder %v1561, 7
      %vm1709 = vcmp.lt.s32.totalorder %v1562, 7
      %v1710 = vsel %vm1702, 1, 0
      %v1711 = vsel %vm1703, 1, 0
      %v1712 = vsel %vm1704, 1, 0
      %v1713 = vsel %vm1705, 1, 0
      %v1714 = vsel %vm1706, 1, 0
      %v1715 = vsel %vm1707, 1, 0
      %v1716 = vsel %vm1708, 1, 0
      %v1717 = vsel %vm1709, 1, 0
      %vm1718 = vcmp.eq.s32.totalorder %v1710, 1
      %vm1719 = vcmp.eq.s32.totalorder %v1711, 1
      %vm1720 = vcmp.eq.s32.totalorder %v1712, 1
      %vm1721 = vcmp.eq.s32.totalorder %v1713, 1
      %vm1722 = vcmp.eq.s32.totalorder %v1714, 1
      %vm1723 = vcmp.eq.s32.totalorder %v1715, 1
      %vm1724 = vcmp.eq.s32.totalorder %v1716, 1
      %vm1725 = vcmp.eq.s32.totalorder %v1717, 1
      %v1726 = vsel %vm1718, %v1694, 0.0
      %v1727 = vsel %vm1719, %v1695, 0.0
      %v1728 = vsel %vm1720, %v1696, 0.0
      %v1729 = vsel %vm1721, %v1697, 0.0
      %v1730 = vsel %vm1722, %v1698, 0.0
      %v1731 = vsel %vm1723, %v1699, 0.0
      %v1732 = vsel %vm1724, %v1700, 0.0
      %v1733 = vsel %vm1725, %v1701, 0.0
      %v1734 = vadd.f32 %v1656, %v1726
      %v1735 = vadd.f32 %v1657, %v1727
      %v1736 = vadd.f32 %v1658, %v1728
      %v1737 = vadd.f32 %v1659, %v1729
      %v1738 = vadd.f32 %v1660, %v1730
      %v1739 = vadd.f32 %v1661, %v1731
      %v1740 = vadd.f32 %v1662, %v1732
      %v1741 = vadd.f32 %v1663, %v1733
      %v1742 = vrot.slane %v314, 7
      %v1743 = vsel %vm1570, %v1582, %v1742
      %v1745 = vlaneseq
      %v1746 = vshrl.u32 %v1745, 7
      %v1747 = vsub.s32 3, %v1746
      %v1748 = vrot.slane %v1444, %v1747
      %v1749 = vmul.f32 %v1591, %v1748
      %v1750 = vmul.f32 %v1573, %v1748
      %v1751 = vmul.f32 %v1575, %v1748
      %v1752 = vmul.f32 %v1577, %v1748
      %v1753 = vmul.f32 %v1579, %v1748
      %v1754 = vmul.f32 %v1581, %v1748
      %v1755 = vmul.f32 %v1583, %v1748
      %v1756 = vmul.f32 %v1743, %v1748
      %v1757 = vsel %vm1620, %v1749, 0.0
      %v1758 = vsel %vm1621, %v1750, 0.0
      %v1759 = vsel %vm1622, %v1751, 0.0
      %v1760 = vsel %vm1623, %v1752, 0.0
      %v1761 = vsel %vm1624, %v1753, 0.0
      %v1762 = vsel %vm1625, %v1754, 0.0
      %v1763 = vsel %vm1626, %v1755, 0.0
      %v1764 = vsel %vm1627, %v1756, 0.0
      %v1765 = vadd.f32 %v1734, %v1757
      %v1766 = vadd.f32 %v1735, %v1758
      %v1767 = vadd.f32 %v1736, %v1759
      %v1768 = vadd.f32 %v1737, %v1760
      %v1769 = vadd.f32 %v1738, %v1761
      %v1770 = vadd.f32 %v1739, %v1762
      %v1771 = vadd.f32 %v1740, %v1763
      %v1772 = vadd.f32 %v1741, %v1764
      %v1773 = vlaneseq
      %v1774 = vshrl.u32 %v1773, 7
      %v1775 = vsub.s32 4, %v1774
      %v1776 = vrot.slane %v1444, %v1775
      %v1777 = vmul.f32 %v307, %v1776
      %v1778 = vmul.f32 %v308, %v1776
      %v1779 = vmul.f32 %v309, %v1776
      %v1780 = vmul.f32 %v310, %v1776
      %v1781 = vmul.f32 %v311, %v1776
      %v1782 = vmul.f32 %v312, %v1776
      %v1783 = vmul.f32 %v313, %v1776
      %v1784 = vmul.f32 %v314, %v1776
      %v1785 = vadd.f32 %v1765, %v1777
      %v1786 = vadd.f32 %v1766, %v1778
      %v1787 = vadd.f32 %v1767, %v1779
      %v1788 = vadd.f32 %v1768, %v1780
      %v1789 = vadd.f32 %v1769, %v1781
      %v1790 = vadd.f32 %v1770, %v1782
      %v1791 = vadd.f32 %v1771, %v1783
      %v1792 = vadd.f32 %v1772, %v1784
      %v1794 = vsel %vm1665, %v1679, 0.0
      %v1795 = vlaneseq
      %v1796 = vshrl.u32 %v1795, 7
      %v1797 = vsub.s32 5, %v1796
      %v1798 = vrot.slane %v1444, %v1797
      %v1799 = vmul.f32 %v1668, %v1798
      %v1800 = vmul.f32 %v1670, %v1798
      %v1801 = vmul.f32 %v1672, %v1798
      %v1802 = vmul.f32 %v1674, %v1798
      %v1803 = vmul.f32 %v1676, %v1798
      %v1804 = vmul.f32 %v1678, %v1798
      %v1805 = vmul.f32 %v1680, %v1798
      %v1806 = vmul.f32 %v1794, %v1798
      %v1807 = vsel %vm1718, %v1799, 0.0
      %v1808 = vsel %vm1719, %v1800, 0.0
      %v1809 = vsel %vm1720, %v1801, 0.0
      %v1810 = vsel %vm1721, %v1802, 0.0
      %v1811 = vsel %vm1722, %v1803, 0.0
      %v1812 = vsel %vm1723, %v1804, 0.0
      %v1813 = vsel %vm1724, %v1805, 0.0
      %v1814 = vsel %vm1725, %v1806, 0.0
      %v1815 = vadd.f32 %v1785, %v1807
      %v1816 = vadd.f32 %v1786, %v1808
      %v1817 = vadd.f32 %v1787, %v1809
      %v1818 = vadd.f32 %v1788, %v1810
      %v1819 = vadd.f32 %v1789, %v1811
      %v1820 = vadd.f32 %v1790, %v1812
      %v1821 = vadd.f32 %v1791, %v1813
      %v1822 = vadd.f32 %v1792, %v1814
      %v1824 = vsel %vm1570, %v1742, 0.0
      %v1825 = vlaneseq
      %v1826 = vshrl.u32 %v1825, 7
      %v1827 = vsub.s32 6, %v1826
      %v1828 = vrot.slane %v1444, %v1827
      %v1829 = vmul.f32 %v1573, %v1828
      %v1830 = vmul.f32 %v1575, %v1828
      %v1831 = vmul.f32 %v1577, %v1828
      %v1832 = vmul.f32 %v1579, %v1828
      %v1833 = vmul.f32 %v1581, %v1828
      %v1834 = vmul.f32 %v1583, %v1828
      %v1835 = vmul.f32 %v1743, %v1828
      %v1836 = vmul.f32 %v1824, %v1828
      %v1837 = vsel %vm1620, %v1829, 0.0
      %v1838 = vsel %vm1621, %v1830, 0.0
      %v1839 = vsel %vm1622, %v1831, 0.0
      %v1840 = vsel %vm1623, %v1832, 0.0
      %v1841 = vsel %vm1624, %v1833, 0.0
      %v1842 = vsel %vm1625, %v1834, 0.0
      %v1843 = vsel %vm1626, %v1835, 0.0
      %v1844 = vsel %vm1627, %v1836, 0.0
      %v1845 = vadd.f32 %v1815, %v1837
      %v1846 = vadd.f32 %v1816, %v1838
      %v1847 = vadd.f32 %v1817, %v1839
      %v1848 = vadd.f32 %v1818, %v1840
      %v1849 = vadd.f32 %v1819, %v1841
      %v1850 = vadd.f32 %v1820, %v1842
      %v1851 = vadd.f32 %v1821, %v1843
      %v1852 = vadd.f32 %v1822, %v1844
      %v1853 = vlaneseq
      %v1854 = vshrl.u32 %v1853, 7
      %v1855 = vsub.s32 7, %v1854
      %v1856 = vrot.slane %v1444, %v1855
      %v1857 = vmul.f32 %v308, %v1856
      %v1858 = vmul.f32 %v309, %v1856
      %v1859 = vmul.f32 %v310, %v1856
      %v1860 = vmul.f32 %v311, %v1856
      %v1861 = vmul.f32 %v312, %v1856
      %v1862 = vmul.f32 %v313, %v1856
      %v1863 = vmul.f32 %v314, %v1856
      %v1864 = vmul.f32 %v1856, 0.0
      %v1865 = vadd.f32 %v1845, %v1857
      %v1866 = vadd.f32 %v1846, %v1858
      %v1867 = vadd.f32 %v1847, %v1859
      %v1868 = vadd.f32 %v1848, %v1860
      %v1869 = vadd.f32 %v1849, %v1861
      %v1870 = vadd.f32 %v1850, %v1862
      %v1871 = vadd.f32 %v1851, %v1863
      %v1872 = vadd.f32 %v1852, %v1864
      %v1873 = vlaneseq
      %v1874 = vshrl.u32 %v1873, 7
      %v1875 = vsub.s32 0, %v1874
      %v1876 = vrot.slane %v1445, %v1875
      %v1877 = vmul.f32 %v1670, %v1876
      %v1878 = vmul.f32 %v1672, %v1876
      %v1879 = vmul.f32 %v1674, %v1876
      %v1880 = vmul.f32 %v1676, %v1876
      %v1881 = vmul.f32 %v1678, %v1876
      %v1882 = vmul.f32 %v1680, %v1876
      %v1883 = vmul.f32 %v1794, %v1876
      %v1884 = vmul.f32 %v1876, 0.0
      %v1885 = vsel %vm1718, %v1877, 0.0
      %v1886 = vsel %vm1719, %v1878, 0.0
      %v1887 = vsel %vm1720, %v1879, 0.0
      %v1888 = vsel %vm1721, %v1880, 0.0
      %v1889 = vsel %vm1722, %v1881, 0.0
      %v1890 = vsel %vm1723, %v1882, 0.0
      %v1891 = vsel %vm1724, %v1883, 0.0
      %v1892 = vsel %vm1725, %v1884, 0.0
      %v1893 = vadd.f32 %v1865, %v1885
      %v1894 = vadd.f32 %v1866, %v1886
      %v1895 = vadd.f32 %v1867, %v1887
      %v1896 = vadd.f32 %v1868, %v1888
      %v1897 = vadd.f32 %v1869, %v1889
      %v1898 = vadd.f32 %v1870, %v1890
      %v1899 = vadd.f32 %v1871, %v1891
      %v1900 = vadd.f32 %v1872, %v1892
      %1901 = vst.msk [vmem:[%s305] sm:$0xff] %vm342, %v1893
      %1902 = vst.msk [vmem:[%s305 + $0x8] sm:$0xff] %vm342, %v1894
      %1903 = vst.msk [vmem:[%s305 + $0x10] sm:$0xff] %vm342, %v1895
      %1904 = vst.msk [vmem:[%s305 + $0x18] sm:$0xff] %vm342, %v1896
      %1905 = vst.msk [vmem:[%s305 + $0x20] sm:$0xff] %vm342, %v1897
      %1906 = vst.msk [vmem:[%s305 + $0x28] sm:$0xff] %vm342, %v1898
      %1907 = vst.msk [vmem:[%s305 + $0x30] sm:$0xff] %vm342, %v1899
      %1908 = vst.msk [vmem:[%s305 + $0x38] sm:$0xff] %vm342, %v1900
      %p1909 = scmp.lt.s32.totalorder %s19, 1
      %s1910 = scalar_select %p1909, %s19, 1
      %s1911 = smul.addr %s1910, 8
      %s1912 = smul.addr %s1911, 8
      %s1913 = scalar_lea.vmem %s8, %s1912
      // Predicated region
      $region53: #{tpu_custom_call.1} parent=51 // pred_check
        %p1914 = pneg %p210
      $region54: #{tpu_custom_call.1} parent=51 // pred_check_branch
        %1916 = sbr.rel (%p1914) target = $region56
      $region55: #{tpu_custom_call.1} parent=51 // pred_region
        _
      $region56: #{tpu_custom_call.1} parent=51 // pred_fallthru
        _
    $region52: #{tpu_custom_call.1} parent=5 // pred_fallthru
      _
    %p1917 = scmp.le.s32.totalorder 2, %s14
    // Predicated region
    $region57: #{tpu_custom_call.1} parent=5 // pred_check
      %p1918 = pneg %p1917
    $region58: #{tpu_custom_call.1} parent=5 // pred_check_branch
      %1920 = sbr.rel (%p1918) target = $region60
    $region59: #{tpu_custom_call.1} parent=5 // pred_region
      %s1921 = ssub.s32 %s14, 2
      // Predicated region
      $region61: #{tpu_custom_call.1} parent=59 // pred_check
        %p1922 = pneg %p216
      $region62: #{tpu_custom_call.1} parent=59 // pred_check_branch
        %1924 = sbr.rel (%p1922) target = $region64
      $region63: #{tpu_custom_call.1} parent=59 // pred_region
        %p1925 = scmp.lt.s32.totalorder %s20, 1
        %s1926 = scalar_select %p1925, %s20, 1
        %s1927 = smul.addr %s1926, 8
        %s1928 = smul.addr %s1927, 8
        %s1929 = scalar_lea.vmem %s8, %s1928
      $region64: #{tpu_custom_call.1} parent=59 // pred_fallthru
        _
    $region60: #{tpu_custom_call.1} parent=5 // pred_fallthru
      _
  $region6: #{tpu_custom_call.1} parent=0 // loop_footer
    %s18 = sadd.s32 1, %s14
  $region7: #{tpu_custom_call.1} parent=0 // loop_footer_branch
    %13 = sbr.rel target = $region3
  $region8: #{tpu_custom_call.1} parent=0 // loop_exit
    _

</llo_original>
